<compile_context>
chip_gen: v6e
topology: v6e:2x2x1
jax: 0.10.0
libtpu: 0.0.40
codegen_flags: <defaults>
</compile_context>

<pallas_src>
import math
import functools

import numpy as np
import jax
import jax.numpy as jnp
from jax import lax
from jax.experimental import pallas as pl
from jax.experimental.pallas import tpu as pltpu


# ------------------------------- fused kernel -------------------------------

def _block_kernel(num_heads, eps, scale,
                  x_ref, n1_ref, n2_ref, wqkv_ref, wo_ref, w1_ref, w2_ref,
                  cos_ref, sin_ref, alpha_ref, o_ref, attn_buf):
    T, D = x_ref.shape
    H = num_heads
    dk = D // H
    half = dk // 2
    f32 = jnp.float32
    bf16 = jnp.bfloat16

    x = x_ref[...]                                            # (T, D) fp32

    # ---- RMSNorm 1:  x / (||x|| * D^-0.5 + eps) * w   (eps outside the root, per spec)
    rms = jnp.sqrt(jnp.sum(x * x, axis=-1, keepdims=True)) * (D ** -0.5)
    h = x / (rms + eps) * n1_ref[...]                         # exact divide (numerics)

    # ---- fused QKV projection: bf16 operands on the MXU, fp32 accumulation
    qkv = jnp.dot(h.astype(bf16), wqkv_ref[...], preferred_element_type=f32)  # (T, 3D)

    cos2 = cos_ref[...]                                       # (T, dk) = [cos | cos]
    sinm = sin_ref[...]                                       # (T, dk) = [-sin | sin]

    def rope(t):  # (T, dk) fp32; roll swaps the halves (XLU slot), rest is VPU
        return t * cos2 + pltpu.roll(t, shift=half, axis=1) * sinm

    # ---- per-head attention with RoPE; each head's AV goes straight to VMEM scratch
    # (no heads list / concat -> only one (T, T) score tensor live at a time).
    for hh in range(H):
        off = hh * dk
        qh = rope(qkv[:, off:off + dk]).astype(bf16)
        kh = rope(qkv[:, D + off:D + off + dk]).astype(bf16)
        vh = qkv[:, 2 * D + off:2 * D + off + dk].astype(bf16)

        s = lax.dot_general(qh, kh, (((1,), (1,)), ((), ())),
                            preferred_element_type=f32) * scale
        s = s - jnp.max(s, axis=-1, keepdims=True)
        p = jnp.exp(s)
        p = p * pl.reciprocal(jnp.sum(p, axis=-1, keepdims=True), approx=True)
        attn_buf[:, off:off + dk] = jnp.dot(p.astype(bf16), vh,
                                            preferred_element_type=f32)

    # ---- output projection + residual (alpha_attn from SMEM)
    attn = jnp.dot(attn_buf[...].astype(bf16), wo_ref[...], preferred_element_type=f32)
    x = x + alpha_ref[0] * attn

    # ---- RMSNorm 2 + SwiGLU (fused) + residual (alpha_mlp from SMEM)
    rms2 = jnp.sqrt(jnp.sum(x * x, axis=-1, keepdims=True)) * (D ** -0.5)
    h2 = x / (rms2 + eps) * n2_ref[...]
    g = jnp.dot(h2.astype(bf16), w1_ref[...], preferred_element_type=f32)      # (T, 2D)
    g1 = g[:, :D]
    g2 = g[:, D:]
    mlp = jnp.dot((g1 * jax.nn.sigmoid(g1) * g2).astype(bf16), w2_ref[...],
                  preferred_element_type=f32)
    o_ref[...] = x + alpha_ref[1] * mlp


# ------------------------------ wrapper / glue -------------------------------

def rope_tables(T, dk):
    # Matches RotaryPositionalEmbedding(dim=d_k): only cos/sin of `freqs` (first half
    # of emb) are used.  Tables are duplicated to full head width and the sign of the
    # first half of sin is folded in, so the kernel needs only roll + two VPU muls.
    half = dk // 2
    inv_freq = 1.0 / (10000.0 ** (np.arange(0, dk, 2, dtype=np.float32) / dk))
    t = np.arange(T, dtype=np.float32)
    freqs = np.einsum('i,j->ij', t, inv_freq)                  # (T, dk//2)
    cos, sin = np.cos(freqs), np.sin(freqs)
    cos2 = np.concatenate([cos, cos], axis=-1)                 # (T, dk)
    sinm = np.concatenate([-sin, sin], axis=-1)                # (T, dk)
    assert half * 2 == dk
    return jnp.asarray(cos2, jnp.float32), jnp.asarray(sinm, jnp.float32)


def advanced_transformer_block(x, params, cos2, sinm, num_heads, eps=1e-6):
    B, T, D = x.shape
    dk = D // num_heads
    scale = 1.0 / math.sqrt(dk)                                # temperature = 1.0

    alpha = jnp.stack([params['alpha_attn'], params['alpha_mlp']]).astype(jnp.float32)
    # bf16 weight storage at the kernel boundary: halves DMA bytes + VMEM, MXU-native.
    wqkv = params['wqkv'].astype(jnp.bfloat16)
    wo = params['wo'].astype(jnp.bfloat16)
    w1 = params['w1'].astype(jnp.bfloat16)
    w2 = params['w2'].astype(jnp.bfloat16)

    kernel = functools.partial(_block_kernel, num_heads, eps, scale)

    # VMEM budget from actual bytes: bf16 weights (double-buffered by the pipeline),
    # fp32 in/out tiles + intermediates (qkv, gate, attn scratch, one (T,T) score),
    # plus headroom; clamped to a value that is safe on v5e/v6e/v7x.
    weight_bytes = 2 * (3 * D * D + D * D + 2 * D * D + D * D)           # bf16, 1 copy
    act_bytes = 4 * T * (2 * D + 3 * D + 2 * D + D + 2 * dk) + 4 * T * T
    vmem_limit = int(min(max(4 * weight_bytes + 4 * act_bytes + (4 << 20), 16 << 20),
                         48 << 20))

    return pl.pallas_call(
        kernel,
        out_shape=jax.ShapeDtypeStruct((B, T, D), jnp.float32),
        grid=(B,),
        in_specs=[
            pl.BlockSpec((None, T, D), lambda b: (b, 0, 0)),            # x (per-batch tile)
            pl.BlockSpec((1, D), lambda b: (0, 0)),                     # norm1 weight
            pl.BlockSpec((1, D), lambda b: (0, 0)),                     # norm2 weight
            pl.BlockSpec((D, 3 * D), lambda b: (0, 0)),                 # fused Wq|Wk|Wv (bf16)
            pl.BlockSpec((D, D), lambda b: (0, 0)),                     # Wo (bf16)
            pl.BlockSpec((D, 2 * D), lambda b: (0, 0)),                 # SwiGLU w1 (bf16)
            pl.BlockSpec((D, D), lambda b: (0, 0)),                     # SwiGLU w2 (bf16)
            pl.BlockSpec((T, dk), lambda b: (0, 0)),                    # cos table [cos|cos]
            pl.BlockSpec((T, dk), lambda b: (0, 0)),                    # sin table [-sin|sin]
            pl.BlockSpec(memory_space=pltpu.MemorySpace.SMEM),          # (alpha_attn, alpha_mlp)
        ],
        out_specs=pl.BlockSpec((None, T, D), lambda b: (b, 0, 0)),
        scratch_shapes=[pltpu.VMEM((T, D), jnp.float32)],               # per-head AV buffer
        compiler_params=pltpu.CompilerParams(
            dimension_semantics=("parallel",),
            vmem_limit_bytes=vmem_limit),
    )(x,
      params['norm1'].reshape(1, D), params['norm2'].reshape(1, D),
      wqkv, wo, w1, w2, cos2, sinm, alpha)


# --------------------------- parameter construction --------------------------

def init_params(key, D):
    ks = jax.random.split(key, 4)
    s = 0.05
    return dict(
        norm1=jnp.ones((D,), jnp.float32),
        norm2=jnp.ones((D,), jnp.float32),
        wqkv=jax.random.normal(ks[0], (D, 3 * D), jnp.float32) * s,   # cat(Wq, Wk, Wv), x @ W
        wo=jax.random.normal(ks[1], (D, D), jnp.float32) * s,
        w1=jax.random.normal(ks[2], (D, 2 * D), jnp.float32) * s,     # SwiGLU w1 (x1 | x2)
        w2=jax.random.normal(ks[3], (D, D), jnp.float32) * s,
        alpha_attn=jnp.float32(1.0),
        alpha_mlp=jnp.float32(1.0),
    )


# ------------------------- pure-JAX fp32 reference ---------------------------

def reference_block(x, params, num_heads, eps=1e-6):
    B, T, D = x.shape
    dk = D // num_heads
    half = dk // 2

    def rmsnorm(v, w):
        n = jnp.sqrt(jnp.sum(v * v, axis=-1, keepdims=True)) * (D ** -0.5)
        return v / (n + eps) * w

    h = rmsnorm(x, params['norm1'])
    qkv = h @ params['wqkv']
    q, k, v = jnp.split(qkv, 3, axis=-1)
    split = lambda t: t.reshape(B, T, num_heads, dk).transpose(0, 2, 1, 3)  # (B,H,T,dk)
    q, k, v = split(q), split(k), split(v)

    inv_freq = 1.0 / (10000.0 ** (np.arange(0, dk, 2, dtype=np.float32) / dk))
    freqs = np.einsum('i,j->ij', np.arange(T, dtype=np.float32), inv_freq)
    cos = jnp.asarray(np.cos(freqs))[None, None]
    sin = jnp.asarray(np.sin(freqs))[None, None]

    def rope(t):
        t1, t2 = t[..., :half], t[..., half:]
        return jnp.concatenate([t1 * cos - t2 * sin, t1 * sin + t2 * cos], axis=-1)

    q, k = rope(q), rope(k)
    s = jnp.einsum('bhtd,bhsd->bhts', q, k) / math.sqrt(dk)
    p = jax.nn.softmax(s - jnp.max(s, axis=-1, keepdims=True), axis=-1)
    av = jnp.einsum('bhts,bhsd->bhtd', p, v)
    attn = av.transpose(0, 2, 1, 3).reshape(B, T, D) @ params['wo']
    x = x + params['alpha_attn'] * attn

    h2 = rmsnorm(x, params['norm2'])
    g = h2 @ params['w1']
    g1, g2 = g[..., :D], g[..., D:]
    mlp = (g1 * jax.nn.sigmoid(g1) * g2) @ params['w2']
    return x + params['alpha_mlp'] * mlp


# ----------------------------------- main ------------------------------------

if __name__ == "__main__":
    B, T, D, H = 2, 16, 128, 2          # batch, seq, d_model, heads  (d_k = 64)
    key = jax.random.PRNGKey(0)
    kx, kp = jax.random.split(key)
    x = jax.random.normal(kx, (B, T, D), jnp.float32)
    params = init_params(kp, D)
    cos2, sinm = rope_tables(T, D // H)   # hoisted out of the block (computed once)

    fwd = jax.jit(functools.partial(advanced_transformer_block, num_heads=H))
    out = fwd(x, params, cos2, sinm)
    jax.block_until_ready(out)

    assert out.shape == (B, T, D), out.shape
    assert bool(jnp.all(jnp.isfinite(out)))

    # Sanity check vs. fp32 JAX reference (loose tolerance: bf16 MXU operands).
    ref = reference_block(x, params, H)
    np.testing.assert_allclose(np.asarray(out), np.asarray(ref), rtol=5e-2, atol=5e-2)

    print("KERNEL_OK")
</pallas_src>

<mosaic_0001>
module attributes {stable_mosaic.version = 11 : i64} {
  func.func @_block_kernel(%arg0: i32, %arg1: memref<1x16x128xf32, #tpu.memory_space<vmem>>, %arg2: memref<1x128xf32, #tpu.memory_space<vmem>>, %arg3: memref<1x128xf32, #tpu.memory_space<vmem>>, %arg4: memref<128x384xbf16, #tpu.memory_space<vmem>>, %arg5: memref<128x128xbf16, #tpu.memory_space<vmem>>, %arg6: memref<128x256xbf16, #tpu.memory_space<vmem>>, %arg7: memref<128x128xbf16, #tpu.memory_space<vmem>>, %arg8: memref<16x64xf32, #tpu.memory_space<vmem>>, %arg9: memref<16x64xf32, #tpu.memory_space<vmem>>, %arg10: memref<2xf32, #tpu.memory_space<smem>>, %arg11: memref<1x16x128xf32, #tpu.memory_space<vmem>>, %arg12: memref<16x128xf32, #tpu.memory_space<vmem>>) attributes {dimension_semantics = [#tpu.dimension_semantics<parallel>], iteration_bounds = array<i64: 2>, scalar_prefetch = 0 : i64, scratch_operands = 1 : i64, tpu.core_type = #tpu.core_type<tc>, window_params = [{transform_indices = @transform_0, window_bounds = array<i64: 1, 16, 128>}, {pipeline_mode = #tpu.pipeline_mode<synchronous>, transform_indices = @transform_1, window_bounds = array<i64: 1, 128>}, {pipeline_mode = #tpu.pipeline_mode<synchronous>, transform_indices = @transform_2, window_bounds = array<i64: 1, 128>}, {pipeline_mode = #tpu.pipeline_mode<synchronous>, transform_indices = @transform_3, window_bounds = array<i64: 128, 384>}, {pipeline_mode = #tpu.pipeline_mode<synchronous>, transform_indices = @transform_4, window_bounds = array<i64: 128, 128>}, {pipeline_mode = #tpu.pipeline_mode<synchronous>, transform_indices = @transform_5, window_bounds = array<i64: 128, 256>}, {pipeline_mode = #tpu.pipeline_mode<synchronous>, transform_indices = @transform_6, window_bounds = array<i64: 128, 128>}, {pipeline_mode = #tpu.pipeline_mode<synchronous>, transform_indices = @transform_7, window_bounds = array<i64: 16, 64>}, {pipeline_mode = #tpu.pipeline_mode<synchronous>, transform_indices = @transform_8, window_bounds = array<i64: 16, 64>}, {transform_indices = @transform_9, window_bounds = array<i64: 2>}, {transform_indices = @transform_10, window_bounds = array<i64: 1, 16, 128>}]} {
    %c0 = arith.constant 0 : index
    %c0_0 = arith.constant 0 : index
    %c0_1 = arith.constant 0 : index
    %0 = vector.load %arg1[%c0, %c0_0, %c0_1] : memref<1x16x128xf32, #tpu.memory_space<vmem>>, vector<1x16x128xf32>
    %1 = vector.shape_cast %0 : vector<1x16x128xf32> to vector<16x128xf32>
    %2 = arith.mulf %1, %1 : vector<16x128xf32>
    %cst = arith.constant dense<0.000000e+00> : vector<16xf32>
    %3 = vector.multi_reduction <add>, %2, %cst [1] : vector<16x128xf32> to vector<16xf32>
    %4 = vector.shape_cast %3 : vector<16xf32> to vector<16x1xf32>
    %5 = math.sqrt %4 : vector<16x1xf32>
    %cst_2 = arith.constant 0.0883883461 : f32
    %6 = vector.broadcast %cst_2 : f32 to vector<16x1xf32>
    %7 = arith.mulf %5, %6 : vector<16x1xf32>
    %cst_3 = arith.constant 9.99999997E-7 : f32
    %8 = vector.broadcast %cst_3 : f32 to vector<16x1xf32>
    %9 = arith.addf %7, %8 : vector<16x1xf32>
    %10 = vector.broadcast %9 : vector<16x1xf32> to vector<16x128xf32>
    %11 = arith.divf %1, %10 : vector<16x128xf32>
    %c0_4 = arith.constant 0 : index
    %c0_5 = arith.constant 0 : index
    %12 = vector.load %arg2[%c0_4, %c0_5] : memref<1x128xf32, #tpu.memory_space<vmem>>, vector<1x128xf32>
    %13 = vector.broadcast %12 : vector<1x128xf32> to vector<16x128xf32>
    %14 = arith.mulf %11, %13 : vector<16x128xf32>
    %15 = arith.truncf %14 : vector<16x128xf32> to vector<16x128xbf16>
    %c0_6 = arith.constant 0 : index
    %c0_7 = arith.constant 0 : index
    %16 = vector.load %arg4[%c0_6, %c0_7] : memref<128x384xbf16, #tpu.memory_space<vmem>>, vector<128x384xbf16>
    %cst_8 = arith.constant dense<0.000000e+00> : vector<16x384xf32>
    %17 = tpu.matmul %15, %16, %cst_8 {dimension_numbers = #tpu.dot_dimension_numbers<[1], [0], [0], [1], [0, 0, 1, 1], [], []>} : vector<16x128xbf16>, vector<128x384xbf16>, vector<16x384xf32> -> vector<16x384xf32>
    %c0_9 = arith.constant 0 : index
    %c0_10 = arith.constant 0 : index
    %18 = vector.load %arg8[%c0_9, %c0_10] : memref<16x64xf32, #tpu.memory_space<vmem>>, vector<16x64xf32>
    %c0_11 = arith.constant 0 : index
    %c0_12 = arith.constant 0 : index
    %19 = vector.load %arg9[%c0_11, %c0_12] : memref<16x64xf32, #tpu.memory_space<vmem>>, vector<16x64xf32>
    %20 = vector.extract_strided_slice %17 {offsets = [0, 0], sizes = [16, 64], strides = [1, 1]} : vector<16x384xf32> to vector<16x64xf32>
    %21 = arith.mulf %20, %18 : vector<16x64xf32>
    %c32_i32 = arith.constant 32 : i32
    %22 = tpu.dynamic_rotate %20 by %c32_i32 dim 1 : vector<16x64xf32>, i32 -> vector<16x64xf32>
    %23 = arith.mulf %22, %19 : vector<16x64xf32>
    %24 = arith.addf %21, %23 : vector<16x64xf32>
    %25 = arith.truncf %24 : vector<16x64xf32> to vector<16x64xbf16>
    %26 = vector.extract_strided_slice %17 {offsets = [0, 128], sizes = [16, 64], strides = [1, 1]} : vector<16x384xf32> to vector<16x64xf32>
    %27 = arith.mulf %26, %18 : vector<16x64xf32>
    %c32_i32_13 = arith.constant 32 : i32
    %28 = tpu.dynamic_rotate %26 by %c32_i32_13 dim 1 : vector<16x64xf32>, i32 -> vector<16x64xf32>
    %29 = arith.mulf %28, %19 : vector<16x64xf32>
    %30 = arith.addf %27, %29 : vector<16x64xf32>
    %31 = arith.truncf %30 : vector<16x64xf32> to vector<16x64xbf16>
    %32 = vector.extract_strided_slice %17 {offsets = [0, 256], sizes = [16, 64], strides = [1, 1]} : vector<16x384xf32> to vector<16x64xf32>
    %33 = arith.truncf %32 : vector<16x64xf32> to vector<16x64xbf16>
    %cst_14 = arith.constant dense<0.000000e+00> : vector<16x16xf32>
    %34 = tpu.matmul %25, %31, %cst_14 {dimension_numbers = #tpu.dot_dimension_numbers<[1], [1], [0], [0], [0, 0, 1, 0], [], []>} : vector<16x64xbf16>, vector<16x64xbf16>, vector<16x16xf32> -> vector<16x16xf32>
    %cst_15 = arith.constant 1.250000e-01 : f32
    %35 = vector.broadcast %cst_15 : f32 to vector<16x16xf32>
    %36 = arith.mulf %34, %35 : vector<16x16xf32>
    %cst_16 = arith.constant dense<0xFF800000> : vector<16xf32>
    %37 = vector.multi_reduction <maximumf>, %36, %cst_16 [1] : vector<16x16xf32> to vector<16xf32>
    %38 = vector.shape_cast %37 : vector<16xf32> to vector<16x1xf32>
    %39 = vector.broadcast %38 : vector<16x1xf32> to vector<16x16xf32>
    %40 = arith.subf %36, %39 : vector<16x16xf32>
    %41 = math.exp %40 : vector<16x16xf32>
    %cst_17 = arith.constant dense<0.000000e+00> : vector<16xf32>
    %42 = vector.multi_reduction <add>, %41, %cst_17 [1] : vector<16x16xf32> to vector<16xf32>
    %43 = vector.shape_cast %42 : vector<16xf32> to vector<16x1xf32>
    %44 = tpu.reciprocal %43 {approx = true} : vector<16x1xf32> -> vector<16x1xf32>
    %45 = vector.broadcast %44 : vector<16x1xf32> to vector<16x16xf32>
    %46 = arith.mulf %41, %45 : vector<16x16xf32>
    %47 = arith.truncf %46 : vector<16x16xf32> to vector<16x16xbf16>
    %cst_18 = arith.constant dense<0.000000e+00> : vector<16x64xf32>
    %48 = tpu.matmul %47, %33, %cst_18 {dimension_numbers = #tpu.dot_dimension_numbers<[1], [0], [0], [1], [0, 0, 1, 1], [], []>} : vector<16x16xbf16>, vector<16x64xbf16>, vector<16x64xf32> -> vector<16x64xf32>
    %c0_19 = arith.constant 0 : index
    %c0_20 = arith.constant 0 : index
    %49 = vector.load %arg12[%c0_19, %c0_20] : memref<16x128xf32, #tpu.memory_space<vmem>>, vector<16x64xf32>
    tpu.vector_store %arg12[%c0_19, %c0_20], %48 {strides = array<i32>} : memref<16x128xf32, #tpu.memory_space<vmem>>, vector<16x64xf32>,
    %50 = vector.extract_strided_slice %17 {offsets = [0, 64], sizes = [16, 64], strides = [1, 1]} : vector<16x384xf32> to vector<16x64xf32>
    %51 = arith.mulf %50, %18 : vector<16x64xf32>
    %c32_i32_21 = arith.constant 32 : i32
    %52 = tpu.dynamic_rotate %50 by %c32_i32_21 dim 1 : vector<16x64xf32>, i32 -> vector<16x64xf32>
    %53 = arith.mulf %52, %19 : vector<16x64xf32>
    %54 = arith.addf %51, %53 : vector<16x64xf32>
    %55 = arith.truncf %54 : vector<16x64xf32> to vector<16x64xbf16>
    %56 = vector.extract_strided_slice %17 {offsets = [0, 192], sizes = [16, 64], strides = [1, 1]} : vector<16x384xf32> to vector<16x64xf32>
    %57 = arith.mulf %56, %18 : vector<16x64xf32>
    %c32_i32_22 = arith.constant 32 : i32
    %58 = tpu.dynamic_rotate %56 by %c32_i32_22 dim 1 : vector<16x64xf32>, i32 -> vector<16x64xf32>
    %59 = arith.mulf %58, %19 : vector<16x64xf32>
    %60 = arith.addf %57, %59 : vector<16x64xf32>
    %61 = arith.truncf %60 : vector<16x64xf32> to vector<16x64xbf16>
    %62 = vector.extract_strided_slice %17 {offsets = [0, 320], sizes = [16, 64], strides = [1, 1]} : vector<16x384xf32> to vector<16x64xf32>
    %63 = arith.truncf %62 : vector<16x64xf32> to vector<16x64xbf16>
    %cst_23 = arith.constant dense<0.000000e+00> : vector<16x16xf32>
    %64 = tpu.matmul %55, %61, %cst_23 {dimension_numbers = #tpu.dot_dimension_numbers<[1], [1], [0], [0], [0, 0, 1, 0], [], []>} : vector<16x64xbf16>, vector<16x64xbf16>, vector<16x16xf32> -> vector<16x16xf32>
    %cst_24 = arith.constant 1.250000e-01 : f32
    %65 = vector.broadcast %cst_24 : f32 to vector<16x16xf32>
    %66 = arith.mulf %64, %65 : vector<16x16xf32>
    %cst_25 = arith.constant dense<0xFF800000> : vector<16xf32>
    %67 = vector.multi_reduction <maximumf>, %66, %cst_25 [1] : vector<16x16xf32> to vector<16xf32>
    %68 = vector.shape_cast %67 : vector<16xf32> to vector<16x1xf32>
    %69 = vector.broadcast %68 : vector<16x1xf32> to vector<16x16xf32>
    %70 = arith.subf %66, %69 : vector<16x16xf32>
    %71 = math.exp %70 : vector<16x16xf32>
    %cst_26 = arith.constant dense<0.000000e+00> : vector<16xf32>
    %72 = vector.multi_reduction <add>, %71, %cst_26 [1] : vector<16x16xf32> to vector<16xf32>
    %73 = vector.shape_cast %72 : vector<16xf32> to vector<16x1xf32>
    %74 = tpu.reciprocal %73 {approx = true} : vector<16x1xf32> -> vector<16x1xf32>
    %75 = vector.broadcast %74 : vector<16x1xf32> to vector<16x16xf32>
    %76 = arith.mulf %71, %75 : vector<16x16xf32>
    %77 = arith.truncf %76 : vector<16x16xf32> to vector<16x16xbf16>
    %cst_27 = arith.constant dense<0.000000e+00> : vector<16x64xf32>
    %78 = tpu.matmul %77, %63, %cst_27 {dimension_numbers = #tpu.dot_dimension_numbers<[1], [0], [0], [1], [0, 0, 1, 1], [], []>} : vector<16x16xbf16>, vector<16x64xbf16>, vector<16x64xf32> -> vector<16x64xf32>
    %c0_28 = arith.constant 0 : index
    %c64 = arith.constant 64 : index
    %79 = vector.load %arg12[%c0_28, %c64] : memref<16x128xf32, #tpu.memory_space<vmem>>, vector<16x64xf32>
    tpu.vector_store %arg12[%c0_28, %c64], %78 {strides = array<i32>} : memref<16x128xf32, #tpu.memory_space<vmem>>, vector<16x64xf32>,
    %c0_29 = arith.constant 0 : index
    %c0_30 = arith.constant 0 : index
    %80 = vector.load %arg12[%c0_29, %c0_30] : memref<16x128xf32, #tpu.memory_space<vmem>>, vector<16x128xf32>
    %81 = arith.truncf %80 : vector<16x128xf32> to vector<16x128xbf16>
    %c0_31 = arith.constant 0 : index
    %c0_32 = arith.constant 0 : index
    %82 = vector.load %arg5[%c0_31, %c0_32] : memref<128x128xbf16, #tpu.memory_space<vmem>>, vector<128x128xbf16>
    %cst_33 = arith.constant dense<0.000000e+00> : vector<16x128xf32>
    %83 = tpu.matmul %81, %82, %cst_33 {dimension_numbers = #tpu.dot_dimension_numbers<[1], [0], [0], [1], [0, 0, 1, 1], [], []>} : vector<16x128xbf16>, vector<128x128xbf16>, vector<16x128xf32> -> vector<16x128xf32>
    %c0_34 = arith.constant 0 : index
    %84 = memref.load %arg10[%c0_34] : memref<2xf32, #tpu.memory_space<smem>>
    %85 = vector.broadcast %84 : f32 to vector<16x128xf32>
    %86 = arith.mulf %85, %83 : vector<16x128xf32>
    %87 = arith.addf %1, %86 : vector<16x128xf32>
    %88 = arith.mulf %87, %87 : vector<16x128xf32>
    %cst_35 = arith.constant dense<0.000000e+00> : vector<16xf32>
    %89 = vector.multi_reduction <add>, %88, %cst_35 [1] : vector<16x128xf32> to vector<16xf32>
    %90 = vector.shape_cast %89 : vector<16xf32> to vector<16x1xf32>
    %91 = math.sqrt %90 : vector<16x1xf32>
    %cst_36 = arith.constant 0.0883883461 : f32
    %92 = vector.broadcast %cst_36 : f32 to vector<16x1xf32>
    %93 = arith.mulf %91, %92 : vector<16x1xf32>
    %cst_37 = arith.constant 9.99999997E-7 : f32
    %94 = vector.broadcast %cst_37 : f32 to vector<16x1xf32>
    %95 = arith.addf %93, %94 : vector<16x1xf32>
    %96 = vector.broadcast %95 : vector<16x1xf32> to vector<16x128xf32>
    %97 = arith.divf %87, %96 : vector<16x128xf32>
    %c0_38 = arith.constant 0 : index
    %c0_39 = arith.constant 0 : index
    %98 = vector.load %arg3[%c0_38, %c0_39] : memref<1x128xf32, #tpu.memory_space<vmem>>, vector<1x128xf32>
    %99 = vector.broadcast %98 : vector<1x128xf32> to vector<16x128xf32>
    %100 = arith.mulf %97, %99 : vector<16x128xf32>
    %101 = arith.truncf %100 : vector<16x128xf32> to vector<16x128xbf16>
    %c0_40 = arith.constant 0 : index
    %c0_41 = arith.constant 0 : index
    %102 = vector.load %arg6[%c0_40, %c0_41] : memref<128x256xbf16, #tpu.memory_space<vmem>>, vector<128x256xbf16>
    %cst_42 = arith.constant dense<0.000000e+00> : vector<16x256xf32>
    %103 = tpu.matmul %101, %102, %cst_42 {dimension_numbers = #tpu.dot_dimension_numbers<[1], [0], [0], [1], [0, 0, 1, 1], [], []>} : vector<16x128xbf16>, vector<128x256xbf16>, vector<16x256xf32> -> vector<16x256xf32>
    %104 = vector.extract_strided_slice %103 {offsets = [0, 0], sizes = [16, 128], strides = [1, 1]} : vector<16x256xf32> to vector<16x128xf32>
    %105 = vector.extract_strided_slice %103 {offsets = [0, 128], sizes = [16, 128], strides = [1, 1]} : vector<16x256xf32> to vector<16x128xf32>
    %106 = arith.negf %104 : vector<16x128xf32>
    %107 = math.exp %106 : vector<16x128xf32>
    %cst_43 = arith.constant 1.000000e+00 : f32
    %108 = vector.broadcast %cst_43 : f32 to vector<16x128xf32>
    %109 = arith.addf %108, %107 : vector<16x128xf32>
    %110 = arith.divf %108, %109 : vector<16x128xf32>
    %111 = arith.mulf %104, %110 : vector<16x128xf32>
    %112 = arith.mulf %111, %105 : vector<16x128xf32>
    %113 = arith.truncf %112 : vector<16x128xf32> to vector<16x128xbf16>
    %c0_44 = arith.constant 0 : index
    %c0_45 = arith.constant 0 : index
    %114 = vector.load %arg7[%c0_44, %c0_45] : memref<128x128xbf16, #tpu.memory_space<vmem>>, vector<128x128xbf16>
    %cst_46 = arith.constant dense<0.000000e+00> : vector<16x128xf32>
    %115 = tpu.matmul %113, %114, %cst_46 {dimension_numbers = #tpu.dot_dimension_numbers<[1], [0], [0], [1], [0, 0, 1, 1], [], []>} : vector<16x128xbf16>, vector<128x128xbf16>, vector<16x128xf32> -> vector<16x128xf32>
    %c1 = arith.constant 1 : index
    %116 = memref.load %arg10[%c1] : memref<2xf32, #tpu.memory_space<smem>>
    %117 = vector.broadcast %116 : f32 to vector<16x128xf32>
    %118 = arith.mulf %117, %115 : vector<16x128xf32>
    %119 = arith.addf %87, %118 : vector<16x128xf32>
    %c0_47 = arith.constant 0 : index
    %c0_48 = arith.constant 0 : index
    %c0_49 = arith.constant 0 : index
    %120 = vector.load %arg11[%c0_47, %c0_48, %c0_49] : memref<1x16x128xf32, #tpu.memory_space<vmem>>, vector<1x16x128xf32>
    %121 = vector.shape_cast %120 : vector<1x16x128xf32> to vector<16x128xf32>
    %122 = vector.shape_cast %119 : vector<16x128xf32> to vector<1x16x128xf32>
    tpu.vector_store %arg11[%c0_47, %c0_48, %c0_49], %122 {strides = array<i32>} : memref<1x16x128xf32, #tpu.memory_space<vmem>>, vector<1x16x128xf32>,
    return
  }
  func.func @transform_0(%arg0: i32) -> (i32, i32, i32) {
    %c0_i32 = arith.constant 0 : i32
    %c0_i32_0 = arith.constant 0 : i32
    %c0_i32_1 = arith.constant 0 : i32
    return %arg0, %c0_i32, %c0_i32_0 : i32, i32, i32
  }
  func.func @transform_1(%arg0: i32) -> (i32, i32) {
    %c0_i32 = arith.constant 0 : i32
    %c0_i32_0 = arith.constant 0 : i32
    %c0_i32_1 = arith.constant 0 : i32
    return %c0_i32, %c0_i32_0 : i32, i32
  }
  func.func @transform_2(%arg0: i32) -> (i32, i32) {
    %c0_i32 = arith.constant 0 : i32
    %c0_i32_0 = arith.constant 0 : i32
    %c0_i32_1 = arith.constant 0 : i32
    return %c0_i32, %c0_i32_0 : i32, i32
  }
  func.func @transform_3(%arg0: i32) -> (i32, i32) {
    %c0_i32 = arith.constant 0 : i32
    %c0_i32_0 = arith.constant 0 : i32
    %c0_i32_1 = arith.constant 0 : i32
    return %c0_i32, %c0_i32_0 : i32, i32
  }
  func.func @transform_4(%arg0: i32) -> (i32, i32) {
    %c0_i32 = arith.constant 0 : i32
    %c0_i32_0 = arith.constant 0 : i32
    %c0_i32_1 = arith.constant 0 : i32
    return %c0_i32, %c0_i32_0 : i32, i32
  }
  func.func @transform_5(%arg0: i32) -> (i32, i32) {
    %c0_i32 = arith.constant 0 : i32
    %c0_i32_0 = arith.constant 0 : i32
    %c0_i32_1 = arith.constant 0 : i32
    return %c0_i32, %c0_i32_0 : i32, i32
  }
  func.func @transform_6(%arg0: i32) -> (i32, i32) {
    %c0_i32 = arith.constant 0 : i32
    %c0_i32_0 = arith.constant 0 : i32
    %c0_i32_1 = arith.constant 0 : i32
    return %c0_i32, %c0_i32_0 : i32, i32
  }
  func.func @transform_7(%arg0: i32) -> (i32, i32) {
    %c0_i32 = arith.constant 0 : i32
    %c0_i32_0 = arith.constant 0 : i32
    %c0_i32_1 = arith.constant 0 : i32
    return %c0_i32, %c0_i32_0 : i32, i32
  }
  func.func @transform_8(%arg0: i32) -> (i32, i32) {
    %c0_i32 = arith.constant 0 : i32
    %c0_i32_0 = arith.constant 0 : i32
    %c0_i32_1 = arith.constant 0 : i32
    return %c0_i32, %c0_i32_0 : i32, i32
  }
  func.func @transform_9(%arg0: i32) -> i32 {
    %c0_i32 = arith.constant 0 : i32
    %c0_i32_0 = arith.constant 0 : i32
    return %c0_i32 : i32
  }
  func.func @transform_10(%arg0: i32) -> (i32, i32, i32) {
    %c0_i32 = arith.constant 0 : i32
    %c0_i32_0 = arith.constant 0 : i32
    %c0_i32_1 = arith.constant 0 : i32
    return %arg0, %c0_i32, %c0_i32_0 : i32, i32, i32
  }
}

</mosaic_0001>

<llo_original>
// kernel: advanced_transformer_block.1
$region0: #{advanced_transformer_block.1}
  #allocation0 [shape = 'u32[]', space=smem, size = 0x4, offset = 0x4, fixed_abs, tag = 'smem constant byte address 0x4 - core index']
  #allocation1 [shape = 'u32[144,128]{1,0:T(1,128)}', space=vmem, size = 0x12000, scoped, tag = 'internal scratch']
  #allocation2 [shape = 'f32[16,128]{1,0:T(8,128)}', space=vmem, size = 0x2000, scoped, tag = 'scratch operand']
  %s0 = inlined_call_operand.vmem [shape: f32[2,16,128], index: 0, kind: input, shape index: {}]
  %s1 = inlined_call_operand.vmem [shape: f32[1,128], index: 1, kind: input, shape index: {}]
  %s2 = inlined_call_operand.vmem [shape: f32[1,128], index: 2, kind: input, shape index: {}]
  %s3 = inlined_call_operand.vmem [shape: bf16[128,384], index: 3, kind: input, shape index: {}]
  %s4 = inlined_call_operand.vmem [shape: bf16[128,128], index: 4, kind: input, shape index: {}]
  %s5 = inlined_call_operand.vmem [shape: bf16[128,256], index: 5, kind: input, shape index: {}]
  %s6 = inlined_call_operand.vmem [shape: bf16[128,128], index: 6, kind: input, shape index: {}]
  %s7 = inlined_call_operand.vmem [shape: f32[16,64], index: 7, kind: input, shape index: {}]
  %s8 = inlined_call_operand.vmem [shape: f32[16,64], index: 8, kind: input, shape index: {}]
  %s9 = inlined_call_operand.vmem [shape: f32[2], index: 9, kind: input, shape index: {}]
  %s10 = inlined_call_operand.hbm [shape: f32[2,16,128], index: 10, kind: output, shape index: {}]
  %s11 = sld [smem:[#allocation0]]
  $region77: #{advanced_transformer_block.1} parent=0
    _
  %s13 = ssub.s32 1, %s11
  %s14 = scalar_select 0, %s13, %s11
  $region1: #{advanced_transformer_block.1} parent=0
    #allocation3 [shape = 'u8[512]{0}', space=smem, size = 0x200, scoped, tag = 'input window, operand 9, single buffered']
    #allocation4 [shape = 's32[2]{0}', space=sflag, size = 0x8, scoped, tag = 'scoped memory for advanced_transformer_block.1']
    #allocation5 [shape = 's32[2]{0}', space=sflag, size = 0x8, scoped, tag = 'scoped memory for advanced_transformer_block.1']
    #allocation6 [shape = 'u8[16384]{0}', space=vmem, size = 0x4000, scoped, tag = 'output window, operand 0']
    %15 = vsyncpa [#allocation5], 0
    %16 = vsyncpa [#allocation4], 0
    %s17 = scalar_lea.sflag [#allocation4], 1
    %18 = vsyncpa %s17, 0
    loop: start=0, step=1, limit=4
    $region2: #{advanced_transformer_block.1} parent=1 // loop_pre_header
      _
    $region3: #{advanced_transformer_block.1} parent=1 // loop_header
      %s20 = sphi 0, %s24
      %p21 = scmp.ge.s32.totalorder %s20, 4
      %s30 = sphi 0, %s32
      %s33 = sphi 0, %s30
      %s34 = sphi 0, %s33
      %s50 = sphi 0, %s34
      %s54 = sphi 0, %s54
      %s56 = sphi 0, %s54
      %s57 = sphi 0, %s56
      %s71 = sphi 0, %s57
      %s75 = sphi 0, %s75
      %s77 = sphi 0, %s75
      %s78 = sphi 0, %s77
      %s92 = sphi 0, %s78
      %s96 = sphi 0, %s96
      %s98 = sphi 0, %s96
      %s99 = sphi 0, %s98
      %s113 = sphi 0, %s99
      %s117 = sphi 0, %s117
      %s119 = sphi 0, %s117
      %s120 = sphi 0, %s119
      %s134 = sphi 0, %s120
      %s138 = sphi 0, %s138
      %s140 = sphi 0, %s138
      %s141 = sphi 0, %s140
      %s155 = sphi 0, %s141
      %s159 = sphi 0, %s159
      %s161 = sphi 0, %s159
      %s162 = sphi 0, %s161
      %s176 = sphi 0, %s162
      %s180 = sphi 0, %s180
      %s182 = sphi 0, %s180
      %s183 = sphi 0, %s182
      %s197 = sphi 0, %s183
      %s201 = sphi 0, %s201
      %s203 = sphi 0, %s201
      %s204 = sphi 0, %s203
      %s218 = sphi 0, %s204
      %s222 = sphi 0, %s222
      %s224 = sphi 0, %s222
      %s225 = sphi 0, %s224
      %s239 = sphi 0, %s225
      %s245 = sphi 0, %s247
      %s248 = sphi 0, %s245
      %s249 = sphi 0, %s248
      %s265 = sphi 0, %s249
    $region4: #{advanced_transformer_block.1} parent=1 // loop_header_branch
      %23 = sbr.rel (%p21) target = $region8
    $region5: #{advanced_transformer_block.1} parent=1 // loop_body
      %s25 = ssub.s32 %s20, 1
      %s26 = ssub.s32 %s20, 2
      %s27 = sadd.s32 %s20, 1
      %s28 = ssub.s32 %s20, %s27
      %p29 = scmp.eq.s32.totalorder %s28, 0
      %s31 = sadd.s32 %s30, 1
      %s32 = scalar_select %p29, %s30, %s31
      %p35 = pneg %p29
      %p36 = scmp.eq.s32.totalorder %s20, 1
      %p37 = por %p35, %p36
      %p38 = scmp.ne.s32.totalorder %s30, %s33
      %p39 = scmp.eq.s32.totalorder %s20, 0
      %p40 = por %p38, %p39
      %p41 = scmp.ne.s32.totalorder %s30, %s33
      %p42 = scmp.eq.s32.totalorder %s25, 1
      %p43 = por %p41, %p42
      %p44 = scmp.ne.s32.totalorder %s33, %s34
      %p45 = scmp.eq.s32.totalorder %s25, 0
      %p46 = por %p44, %p45
      %p47 = scmp.ne.s32.totalorder %s33, %s34
      %p48 = scmp.eq.s32.totalorder %s26, 1
      %p49 = por %p47, %p48
      %p51 = scmp.ne.s32.totalorder %s34, %s50
      %p52 = scmp.eq.s32.totalorder %s26, 0
      %p53 = por %p51, %p52
      %s55 = sadd.s32 %s54, 1
      %p58 = scmp.eq.s32.totalorder %s20, 1
      %p59 = scmp.ne.s32.totalorder %s54, %s56
      %p60 = scmp.eq.s32.totalorder %s20, 0
      %p61 = por %p59, %p60
      %p62 = scmp.ne.s32.totalorder %s54, %s56
      %p63 = scmp.eq.s32.totalorder %s25, 1
      %p64 = por %p62, %p63
      %p65 = scmp.ne.s32.totalorder %s56, %s57
      %p66 = scmp.eq.s32.totalorder %s25, 0
      %p67 = por %p65, %p66
      %p68 = scmp.ne.s32.totalorder %s56, %s57
      %p69 = scmp.eq.s32.totalorder %s26, 1
      %p70 = por %p68, %p69
      %p72 = scmp.ne.s32.totalorder %s57, %s71
      %p73 = scmp.eq.s32.totalorder %s26, 0
      %p74 = por %p72, %p73
      %s76 = sadd.s32 %s75, 1
      %p79 = scmp.eq.s32.totalorder %s20, 1
      %p80 = scmp.ne.s32.totalorder %s75, %s77
      %p81 = scmp.eq.s32.totalorder %s20, 0
      %p82 = por %p80, %p81
      %p83 = scmp.ne.s32.totalorder %s75, %s77
      %p84 = scmp.eq.s32.totalorder %s25, 1
      %p85 = por %p83, %p84
      %p86 = scmp.ne.s32.totalorder %s77, %s78
      %p87 = scmp.eq.s32.totalorder %s25, 0
      %p88 = por %p86, %p87
      %p89 = scmp.ne.s32.totalorder %s77, %s78
      %p90 = scmp.eq.s32.totalorder %s26, 1
      %p91 = por %p89, %p90
      %p93 = scmp.ne.s32.totalorder %s78, %s92
      %p94 = scmp.eq.s32.totalorder %s26, 0
      %p95 = por %p93, %p94
      %s97 = sadd.s32 %s96, 1
      %p100 = scmp.eq.s32.totalorder %s20, 1
      %p101 = scmp.ne.s32.totalorder %s96, %s98
      %p102 = scmp.eq.s32.totalorder %s20, 0
      %p103 = por %p101, %p102
      %p104 = scmp.ne.s32.totalorder %s96, %s98
      %p105 = scmp.eq.s32.totalorder %s25, 1
      %p106 = por %p104, %p105
      %p107 = scmp.ne.s32.totalorder %s98, %s99
      %p108 = scmp.eq.s32.totalorder %s25, 0
      %p109 = por %p107, %p108
      %p110 = scmp.ne.s32.totalorder %s98, %s99
      %p111 = scmp.eq.s32.totalorder %s26, 1
      %p112 = por %p110, %p111
      %p114 = scmp.ne.s32.totalorder %s99, %s113
      %p115 = scmp.eq.s32.totalorder %s26, 0
      %p116 = por %p114, %p115
      %s118 = sadd.s32 %s117, 1
      %p121 = scmp.eq.s32.totalorder %s20, 1
      %p122 = scmp.ne.s32.totalorder %s117, %s119
      %p123 = scmp.eq.s32.totalorder %s20, 0
      %p124 = por %p122, %p123
      %p125 = scmp.ne.s32.totalorder %s117, %s119
      %p126 = scmp.eq.s32.totalorder %s25, 1
      %p127 = por %p125, %p126
      %p128 = scmp.ne.s32.totalorder %s119, %s120
      %p129 = scmp.eq.s32.totalorder %s25, 0
      %p130 = por %p128, %p129
      %p131 = scmp.ne.s32.totalorder %s119, %s120
      %p132 = scmp.eq.s32.totalorder %s26, 1
      %p133 = por %p131, %p132
      %p135 = scmp.ne.s32.totalorder %s120, %s134
      %p136 = scmp.eq.s32.totalorder %s26, 0
      %p137 = por %p135, %p136
      %s139 = sadd.s32 %s138, 1
      %p142 = scmp.eq.s32.totalorder %s20, 1
      %p143 = scmp.ne.s32.totalorder %s138, %s140
      %p144 = scmp.eq.s32.totalorder %s20, 0
      %p145 = por %p143, %p144
      %p146 = scmp.ne.s32.totalorder %s138, %s140
      %p147 = scmp.eq.s32.totalorder %s25, 1
      %p148 = por %p146, %p147
      %p149 = scmp.ne.s32.totalorder %s140, %s141
      %p150 = scmp.eq.s32.totalorder %s25, 0
      %p151 = por %p149, %p150
      %p152 = scmp.ne.s32.totalorder %s140, %s141
      %p153 = scmp.eq.s32.totalorder %s26, 1
      %p154 = por %p152, %p153
      %p156 = scmp.ne.s32.totalorder %s141, %s155
      %p157 = scmp.eq.s32.totalorder %s26, 0
      %p158 = por %p156, %p157
      %s160 = sadd.s32 %s159, 1
      %p163 = scmp.eq.s32.totalorder %s20, 1
      %p164 = scmp.ne.s32.totalorder %s159, %s161
      %p165 = scmp.eq.s32.totalorder %s20, 0
      %p166 = por %p164, %p165
      %p167 = scmp.ne.s32.totalorder %s159, %s161
      %p168 = scmp.eq.s32.totalorder %s25, 1
      %p169 = por %p167, %p168
      %p170 = scmp.ne.s32.totalorder %s161, %s162
      %p171 = scmp.eq.s32.totalorder %s25, 0
      %p172 = por %p170, %p171
      %p173 = scmp.ne.s32.totalorder %s161, %s162
      %p174 = scmp.eq.s32.totalorder %s26, 1
      %p175 = por %p173, %p174
      %p177 = scmp.ne.s32.totalorder %s162, %s176
      %p178 = scmp.eq.s32.totalorder %s26, 0
      %p179 = por %p177, %p178
      %s181 = sadd.s32 %s180, 1
      %p184 = scmp.eq.s32.totalorder %s20, 1
      %p185 = scmp.ne.s32.totalorder %s180, %s182
      %p186 = scmp.eq.s32.totalorder %s20, 0
      %p187 = por %p185, %p186
      %p188 = scmp.ne.s32.totalorder %s180, %s182
      %p189 = scmp.eq.s32.totalorder %s25, 1
      %p190 = por %p188, %p189
      %p191 = scmp.ne.s32.totalorder %s182, %s183
      %p192 = scmp.eq.s32.totalorder %s25, 0
      %p193 = por %p191, %p192
      %p194 = scmp.ne.s32.totalorder %s182, %s183
      %p195 = scmp.eq.s32.totalorder %s26, 1
      %p196 = por %p194, %p195
      %p198 = scmp.ne.s32.totalorder %s183, %s197
      %p199 = scmp.eq.s32.totalorder %s26, 0
      %p200 = por %p198, %p199
      %s202 = sadd.s32 %s201, 1
      %p205 = scmp.eq.s32.totalorder %s20, 1
      %p206 = scmp.ne.s32.totalorder %s201, %s203
      %p207 = scmp.eq.s32.totalorder %s20, 0
      %p208 = por %p206, %p207
      %p209 = scmp.ne.s32.totalorder %s201, %s203
      %p210 = scmp.eq.s32.totalorder %s25, 1
      %p211 = por %p209, %p210
      %p212 = scmp.ne.s32.totalorder %s203, %s204
      %p213 = scmp.eq.s32.totalorder %s25, 0
      %p214 = por %p212, %p213
      %p215 = scmp.ne.s32.totalorder %s203, %s204
      %p216 = scmp.eq.s32.totalorder %s26, 1
      %p217 = por %p215, %p216
      %p219 = scmp.ne.s32.totalorder %s204, %s218
      %p220 = scmp.eq.s32.totalorder %s26, 0
      %p221 = por %p219, %p220
      %s223 = sadd.s32 %s222, 1
      %p226 = scmp.eq.s32.totalorder %s20, 1
      %p227 = scmp.ne.s32.totalorder %s222, %s224
      %p228 = scmp.eq.s32.totalorder %s20, 0
      %p229 = por %p227, %p228
      %p230 = scmp.ne.s32.totalorder %s222, %s224
      %p231 = scmp.eq.s32.totalorder %s25, 1
      %p232 = por %p230, %p231
      %p233 = scmp.ne.s32.totalorder %s224, %s225
      %p234 = scmp.eq.s32.totalorder %s25, 0
      %p235 = por %p233, %p234
      %p236 = scmp.ne.s32.totalorder %s224, %s225
      %p237 = scmp.eq.s32.totalorder %s26, 1
      %p238 = por %p236, %p237
      %p240 = scmp.ne.s32.totalorder %s225, %s239
      %p241 = scmp.eq.s32.totalorder %s26, 0
      %p242 = por %p240, %p241
      %s243 = ssub.s32 %s20, %s27
      %p244 = scmp.eq.s32.totalorder %s243, 0
      %s246 = sadd.s32 %s245, 1
      %s247 = scalar_select %p244, %s245, %s246
      %p250 = pneg %p244
      %p251 = scmp.eq.s32.totalorder %s20, 1
      %p252 = por %p250, %p251
      %p253 = scmp.ne.s32.totalorder %s245, %s248
      %p254 = scmp.eq.s32.totalorder %s20, 0
      %p255 = por %p253, %p254
      %p256 = scmp.ne.s32.totalorder %s245, %s248
      %p257 = scmp.eq.s32.totalorder %s25, 1
      %p258 = por %p256, %p257
      %p259 = scmp.ne.s32.totalorder %s248, %s249
      %p260 = scmp.eq.s32.totalorder %s25, 0
      %p261 = por %p259, %p260
      %p262 = scmp.ne.s32.totalorder %s248, %s249
      %p263 = scmp.eq.s32.totalorder %s26, 1
      %p264 = por %p262, %p263
      %p266 = scmp.ne.s32.totalorder %s249, %s265
      %p267 = scmp.eq.s32.totalorder %s26, 0
      %p268 = por %p266, %p267
      %p269 = scmp.le.s32.totalorder 1, %s20
      %p270 = scmp.lt.s32.totalorder %s20, 3
      %p271 = pnand %p269, %p270
      %p272 = pneg %p271
      // Predicated region
      $region9: #{advanced_transformer_block.1} parent=5 // pred_check
        _
      $region10: #{advanced_transformer_block.1} parent=5 // pred_check_branch
        %274 = sbr.rel (%p271) target = $region12
      $region11: #{advanced_transformer_block.1} parent=5 // pred_region
        %s275 = ssub.s32 %s20, 1
        // Predicated region
        $region13: #{advanced_transformer_block.1} parent=11 // pred_check
          %p276 = pneg %p67
        $region14: #{advanced_transformer_block.1} parent=11 // pred_check_branch
          %278 = sbr.rel (%p276) target = $region16
        $region15: #{advanced_transformer_block.1} parent=11 // pred_region
          _
        $region16: #{advanced_transformer_block.1} parent=11 // pred_fallthru
          _
        // Predicated region
        $region17: #{advanced_transformer_block.1} parent=11 // pred_check
          %p279 = pneg %p88
        $region18: #{advanced_transformer_block.1} parent=11 // pred_check_branch
          %281 = sbr.rel (%p279) target = $region20
        $region19: #{advanced_transformer_block.1} parent=11 // pred_region
          _
        $region20: #{advanced_transformer_block.1} parent=11 // pred_fallthru
          _
        // Predicated region
        $region21: #{advanced_transformer_block.1} parent=11 // pred_check
          %p282 = pneg %p109
        $region22: #{advanced_transformer_block.1} parent=11 // pred_check_branch
          %284 = sbr.rel (%p282) target = $region24
        $region23: #{advanced_transformer_block.1} parent=11 // pred_region
          _
        $region24: #{advanced_transformer_block.1} parent=11 // pred_fallthru
          _
        // Predicated region
        $region25: #{advanced_transformer_block.1} parent=11 // pred_check
          %p285 = pneg %p130
        $region26: #{advanced_transformer_block.1} parent=11 // pred_check_branch
          %287 = sbr.rel (%p285) target = $region28
        $region27: #{advanced_transformer_block.1} parent=11 // pred_region
          _
        $region28: #{advanced_transformer_block.1} parent=11 // pred_fallthru
          _
        // Predicated region
        $region29: #{advanced_transformer_block.1} parent=11 // pred_check
          %p288 = pneg %p151
        $region30: #{advanced_transformer_block.1} parent=11 // pred_check_branch
          %290 = sbr.rel (%p288) target = $region32
        $region31: #{advanced_transformer_block.1} parent=11 // pred_region
          _
        $region32: #{advanced_transformer_block.1} parent=11 // pred_fallthru
          _
        // Predicated region
        $region33: #{advanced_transformer_block.1} parent=11 // pred_check
          %p291 = pneg %p172
        $region34: #{advanced_transformer_block.1} parent=11 // pred_check_branch
          %293 = sbr.rel (%p291) target = $region36
        $region35: #{advanced_transformer_block.1} parent=11 // pred_region
          _
        $region36: #{advanced_transformer_block.1} parent=11 // pred_fallthru
          _
        // Predicated region
        $region37: #{advanced_transformer_block.1} parent=11 // pred_check
          %p294 = pneg %p193
        $region38: #{advanced_transformer_block.1} parent=11 // pred_check_branch
          %296 = sbr.rel (%p294) target = $region40
        $region39: #{advanced_transformer_block.1} parent=11 // pred_region
          _
        $region40: #{advanced_transformer_block.1} parent=11 // pred_fallthru
          _
        // Predicated region
        $region41: #{advanced_transformer_block.1} parent=11 // pred_check
          %p297 = pneg %p214
        $region42: #{advanced_transformer_block.1} parent=11 // pred_check_branch
          %299 = sbr.rel (%p297) target = $region44
        $region43: #{advanced_transformer_block.1} parent=11 // pred_region
          _
        $region44: #{advanced_transformer_block.1} parent=11 // pred_fallthru
          _
        // Predicated region
        $region45: #{advanced_transformer_block.1} parent=11 // pred_check
          %p300 = pneg %p235
        $region46: #{advanced_transformer_block.1} parent=11 // pred_check_branch
          %302 = sbr.rel (%p300) target = $region48
        $region47: #{advanced_transformer_block.1} parent=11 // pred_region
          %s304 = ssub.s32 16, 16
          %305 = vsyncadd [#allocation5], %s304
          %s307 = sshll.u32 %s9, 4
          %s308 = int_to_ptr.vmem [resolvable:$true] %s307
          %310 = dma.vmem_to_smem %s308, 16, [#allocation3], [#allocation5]
        $region48: #{advanced_transformer_block.1} parent=11 // pred_fallthru
          _
      $region12: #{advanced_transformer_block.1} parent=5 // pred_fallthru
        _
      %p311 = scmp.lt.s32.totalorder %s20, 2
      // Predicated region
      $region49: #{advanced_transformer_block.1} parent=5 // pred_check
        %p312 = pneg %p311
      $region50: #{advanced_transformer_block.1} parent=5 // pred_check_branch
        %314 = sbr.rel (%p312) target = $region52
      $region51: #{advanced_transformer_block.1} parent=5 // pred_region
        // Predicated region
        $region53: #{advanced_transformer_block.1} parent=51 // pred_check
          %p315 = pneg %p40
        $region54: #{advanced_transformer_block.1} parent=51 // pred_check_branch
          %317 = sbr.rel (%p315) target = $region56
        $region55: #{advanced_transformer_block.1} parent=51 // pred_region
          %p318 = scmp.lt.s32.totalorder %s20, 1
          %s319 = scalar_select %p318, %s20, 1
          %s320 = smul.addr %s319, 2
          %s321 = smul.addr %s320, 8
          %s322 = scalar_lea.vmem %s0, %s321
        $region56: #{advanced_transformer_block.1} parent=51 // pred_fallthru
          _
      $region52: #{advanced_transformer_block.1} parent=5 // pred_fallthru
        _
      %p323 = scmp.le.s32.totalorder 1, %s20
      %p324 = scmp.lt.s32.totalorder %s20, 3
      %p325 = pnand %p323, %p324
      %p326 = pneg %p325
      // Predicated region
      $region57: #{advanced_transformer_block.1} parent=5 // pred_check
        _
      $region58: #{advanced_transformer_block.1} parent=5 // pred_check_branch
        %328 = sbr.rel (%p325) target = $region60
      $region59: #{advanced_transformer_block.1} parent=5 // pred_region
        %s329 = ssub.s32 %s20, 1
        // Predicated region
        $region61: #{advanced_transformer_block.1} parent=59 // pred_check
          %p330 = pneg %p235
        $region62: #{advanced_transformer_block.1} parent=59 // pred_check_branch
          %332 = sbr.rel (%p330) target = $region64
        $region63: #{advanced_transformer_block.1} parent=59 // pred_region
          %333 = dma.done [#allocation5], 16
        $region64: #{advanced_transformer_block.1} parent=59 // pred_fallthru
          _
        %334 = sfence
        %p335 = scmp.lt.s32.totalorder %s25, 1
        %s336 = scalar_select %p335, %s25, 1
        %s337 = smul.addr %s336, 2
        %s338 = smul.addr %s337, 8
        %s339 = scalar_lea.vmem %s0, %s338
        %p340 = pneg %p46
        %p341 = pneg %p43
        %p342 = pneg %p67
        %p343 = pneg %p64
        %p344 = pneg %p88
        %p345 = pneg %p85
        %p346 = pneg %p109
        %p347 = pneg %p106
        %p348 = pneg %p130
        %p349 = pneg %p127
        %p350 = pneg %p151
        %p351 = pneg %p148
        %p352 = pneg %p172
        %p353 = pneg %p169
        %p354 = pneg %p193
        %p355 = pneg %p190
        %p356 = pneg %p214
        %p357 = pneg %p211
        %p358 = pneg %p235
        %p359 = pneg %p232
        %p360 = pneg %p261
        %p361 = pneg %p258
        %s362 = sand.u32 %s248, 1
        %s363 = scalar_lea.sflag [#allocation4], %s362
        %s364 = sand.u32 %s248, 1
        %s365 = smul.addr %s364, 16
        %s366 = scalar_lea.vmem [#allocation6], %s365
        %p367 = scmp.lt.s32.totalorder %s25, 1
        %s368 = scalar_select %p367, %s25, 1
        %s369 = smul.addr %s368, 2
        %s370 = smul.addr %s369, 8
        %s371 = scalar_lea.vmem %s0, %s370
        %v373 = vld [vmem:[%s371] sm:$0xff]
        %v374 = vld [vmem:[%s371 + $0x8] sm:$0xff]
        %v375 = vmul.f32 %v373, %v373
        %v376 = vmul.f32 %v374, %v374
        %377 = vadd.xlane.f32.xlu0 %v375
        %v378 = vpop.xlane.xlu0 %377
        %379 = vadd.xlane.f32.xlu0 %v376
        %v380 = vpop.xlane.xlu0 %379
        %v381 = vrsqrt.pop %v378
        %v382 = vmul.f32 %v378, %v381
        %vm383 = vcmp.eq.f32.partialorder %v378, inf
        %v384 = vsel %vm383, %v378, %v382
        %vm385 = vcmp.eq.f32.partialorder %v378, 0.0
        %v386 = vand.u32 %v378, 2147483648
        %v387 = vsel %vm385, %v386, %v384
        %v388 = vrsqrt.pop %v380
        %v389 = vmul.f32 %v380, %v388
        %vm390 = vcmp.eq.f32.partialorder %v380, inf
        %v391 = vsel %vm390, %v380, %v389
        %vm392 = vcmp.eq.f32.partialorder %v380, 0.0
        %v393 = vand.u32 %v380, 2147483648
        %v394 = vsel %vm392, %v393, %v391
        %v395 = vmul.f32 %v387, 0.088388346
        %v396 = vmul.f32 %v394, 0.088388346
        %v397 = vadd.f32 %v395, 1e-06
        %v398 = vadd.f32 %v396, 1e-06
        %v399 = vrcp.pop %v397
        %v400 = vmul.f32 %v373, %v399
        %v401 = vrcp.pop %v398
        %v402 = vmul.f32 %v374, %v401
        %v403 = vld [vmem:[%s1] sm:$0x1]
        %v405 = vlaneseq
        %v406 = vshrl.u32 %v405, 7
        %v407 = vsub.s32 0, %v406
        %v408 = vrot.slane %v403, %v407
        %v410 = vmul.f32 %v400, %v408
        %v411 = vmul.f32 %v402, %v408
        %v412 = vpack.c.bf16 %v411, %v410
        %v413 = vld [vmem:[%s3] sm:$0xff]
        %v414 = vld [vmem:[%s3 + $0x8] sm:$0xf]
        %v415 = vld [vmem:[%s3 + $0xc] sm:$0xff]
        %v416 = vld [vmem:[%s3 + $0x14] sm:$0xf]
        %v417 = vld [vmem:[%s3 + $0x18] sm:$0xff]
        %v418 = vld [vmem:[%s3 + $0x20] sm:$0xf]
        %v419 = vld [vmem:[%s3 + $0x24] sm:$0xff]
        %v420 = vld [vmem:[%s3 + $0x2c] sm:$0xf]
        %v421 = vld [vmem:[%s3 + $0x30] sm:$0xff]
        %v422 = vld [vmem:[%s3 + $0x38] sm:$0xf]
        %v423 = vld [vmem:[%s3 + $0x3c] sm:$0xff]
        %v424 = vld [vmem:[%s3 + $0x44] sm:$0xf]
        %v425 = vld [vmem:[%s3 + $0x48] sm:$0xff]
        %v426 = vld [vmem:[%s3 + $0x50] sm:$0xf]
        %v427 = vld [vmem:[%s3 + $0x54] sm:$0xff]
        %v428 = vld [vmem:[%s3 + $0x5c] sm:$0xf]
        %v429 = vld [vmem:[%s3 + $0x60] sm:$0xff]
        %v430 = vld [vmem:[%s3 + $0x68] sm:$0xf]
        %v431 = vld [vmem:[%s3 + $0x6c] sm:$0xff]
        %v432 = vld [vmem:[%s3 + $0x74] sm:$0xf]
        %v433 = vld [vmem:[%s3 + $0x78] sm:$0xff]
        %v434 = vld [vmem:[%s3 + $0x80] sm:$0xf]
        %v435 = vld [vmem:[%s3 + $0x84] sm:$0xff]
        %v436 = vld [vmem:[%s3 + $0x8c] sm:$0xf]
        %v437 = vld [vmem:[%s3 + $0x90] sm:$0xff]
        %v438 = vld [vmem:[%s3 + $0x98] sm:$0xf]
        %v439 = vld [vmem:[%s3 + $0x9c] sm:$0xff]
        %v440 = vld [vmem:[%s3 + $0xa4] sm:$0xf]
        %v441 = vld [vmem:[%s3 + $0xa8] sm:$0xff]
        %v442 = vld [vmem:[%s3 + $0xb0] sm:$0xf]
        %v443 = vld [vmem:[%s3 + $0xb4] sm:$0xff]
        %v444 = vld [vmem:[%s3 + $0xbc] sm:$0xf]
        %v477 = vunpack.c.l.b16 %v413
        %v478 = vunpack.c.h.b16 %v413
        %v479 = vunpack.c.l.b16 %v414
        %v480 = vunpack.c.l.b16 %v415
        %v481 = vunpack.c.h.b16 %v415
        %v482 = vunpack.c.l.b16 %v416
        %v483 = vunpack.c.l.b16 %v417
        %v484 = vunpack.c.h.b16 %v417
        %v485 = vunpack.c.l.b16 %v418
        %v486 = vunpack.c.l.b16 %v419
        %v487 = vunpack.c.h.b16 %v419
        %v488 = vunpack.c.l.b16 %v420
        %v489 = vunpack.c.l.b16 %v421
        %v490 = vunpack.c.h.b16 %v421
        %v491 = vunpack.c.l.b16 %v422
        %v492 = vunpack.c.l.b16 %v423
        %v493 = vunpack.c.h.b16 %v423
        %v494 = vunpack.c.l.b16 %v424
        %v495 = vunpack.c.l.b16 %v425
        %v496 = vunpack.c.h.b16 %v425
        %v497 = vunpack.c.l.b16 %v426
        %v498 = vunpack.c.l.b16 %v427
        %v499 = vunpack.c.h.b16 %v427
        %v500 = vunpack.c.l.b16 %v428
        %v501 = vunpack.c.l.b16 %v429
        %v502 = vunpack.c.h.b16 %v429
        %v503 = vunpack.c.l.b16 %v430
        %v504 = vunpack.c.l.b16 %v431
        %v505 = vunpack.c.h.b16 %v431
        %v506 = vunpack.c.l.b16 %v432
        %v507 = vunpack.c.l.b16 %v433
        %v508 = vunpack.c.h.b16 %v433
        %v509 = vunpack.c.l.b16 %v434
        %v510 = vunpack.c.l.b16 %v435
        %v511 = vunpack.c.h.b16 %v435
        %v512 = vunpack.c.l.b16 %v436
        %v513 = vunpack.c.l.b16 %v437
        %v514 = vunpack.c.h.b16 %v437
        %v515 = vunpack.c.l.b16 %v438
        %v516 = vunpack.c.l.b16 %v439
        %v517 = vunpack.c.h.b16 %v439
        %v518 = vunpack.c.l.b16 %v440
        %v519 = vunpack.c.l.b16 %v441
        %v520 = vunpack.c.h.b16 %v441
        %v521 = vunpack.c.l.b16 %v442
        %v522 = vunpack.c.l.b16 %v443
        %v523 = vunpack.c.h.b16 %v443
        %v524 = vunpack.c.l.b16 %v444
        %v525 = vpack.c.b16 %v480, %v477
        %v526 = vpack.c.b16 %v481, %v478
        %v527 = vpack.c.b16 %v482, %v479
        %v528 = vpack.c.b16 %v486, %v483
        %v529 = vpack.c.b16 %v487, %v484
        %v530 = vpack.c.b16 %v488, %v485
        %v531 = vpack.c.b16 %v492, %v489
        %v532 = vpack.c.b16 %v493, %v490
        %v533 = vpack.c.b16 %v494, %v491
        %v534 = vpack.c.b16 %v498, %v495
        %v535 = vpack.c.b16 %v499, %v496
        %v536 = vpack.c.b16 %v500, %v497
        %v537 = vpack.c.b16 %v504, %v501
        %v538 = vpack.c.b16 %v505, %v502
        %v539 = vpack.c.b16 %v506, %v503
        %v540 = vpack.c.b16 %v510, %v507
        %v541 = vpack.c.b16 %v511, %v508
        %v542 = vpack.c.b16 %v512, %v509
        %v543 = vpack.c.b16 %v516, %v513
        %v544 = vpack.c.b16 %v517, %v514
        %v545 = vpack.c.b16 %v518, %v515
        %v546 = vpack.c.b16 %v522, %v519
        %v547 = vpack.c.b16 %v523, %v520
        %v548 = vpack.c.b16 %v524, %v521
        %573 = vmatprep.subr.bf16.mxu0 %v547
        %574 = vmatpush1.bf16.msra.mxu0 %v546
        %575 = vmatprep.subr.bf16.mxu0 %v544
        %576 = vmatpush1.bf16.msra.mxu0 %v543
        %577 = vmatprep.subr.bf16.mxu0 %v541
        %578 = vmatpush1.bf16.msra.mxu0 %v540
        %579 = vmatprep.subr.bf16.mxu0 %v538
        %580 = vmatpush1.bf16.msra.mxu0 %v537
        %581 = vmatprep.subr.bf16.mxu0 %v535
        %582 = vmatpush1.bf16.msra.mxu0 %v534
        %583 = vmatprep.subr.bf16.mxu0 %v532
        %584 = vmatpush1.bf16.msra.mxu0 %v531
        %585 = vmatprep.subr.bf16.mxu0 %v529
        %586 = vmatpush1.bf16.msra.mxu0 %v528
        %587 = vmatprep.subr.bf16.mxu0 %v526
        %588 = vmatpush1.bf16.msra.mxu0 %v525
        %589 = vmatprep.subr.bf16.mxu0 0
        %590 = vmatpush2.bf16.msra.mxu0 0
        %591 = vmatprep.subr.bf16.mxu0 0
        %592 = vmatpush2.bf16.msra.mxu0 0
        %593 = vmatprep.subr.bf16.mxu0 0
        %594 = vmatpush2.bf16.msra.mxu0 0
        %595 = vmatprep.subr.bf16.mxu0 0
        %596 = vmatpush2.bf16.msra.mxu0 0
        %597 = vmatprep.subr.bf16.mxu0 0
        %598 = vmatpush2.bf16.msra.mxu0 0
        %599 = vmatprep.subr.bf16.mxu0 0
        %600 = vmatpush2.bf16.msra.mxu0 0
        %601 = vmatprep.subr.bf16.mxu0 0
        %602 = vmatpush2.bf16.msra.mxu0 0
        %603 = vmatprep.subr.bf16.mxu0 0
        %604 = vmatpush2.bf16.msra.mxu0 0
        %605 = vmatprep.mubr.bf16.mxu0 0
        %606 = vmatmul.mubr.bf16.gmra.mxu0 %v412
        %v607 = vpop.f32.mrf.mxu0
        %v608 = vadd.f32 0.0, %v607
        %v609 = vpop.f32.mrf.mxu0
        %v610 = vadd.f32 0.0, %v609
        %v611 = vpop.f32.mrf.mxu0
        %v612 = vadd.f32 0.0, %v611
        %v613 = vpop.f32.mrf.mxu0
        %v614 = vadd.f32 0.0, %v613
        %615 = vdwg.mxu0
        %616 = vmatprep.subr.bf16.mxu0 0
        %617 = vmatpush1.bf16.msra.mxu0 %v548
        %618 = vmatprep.subr.bf16.mxu0 0
        %619 = vmatpush1.bf16.msra.mxu0 %v545
        %620 = vmatprep.subr.bf16.mxu0 0
        %621 = vmatpush1.bf16.msra.mxu0 %v542
        %622 = vmatprep.subr.bf16.mxu0 0
        %623 = vmatpush1.bf16.msra.mxu0 %v539
        %624 = vmatprep.subr.bf16.mxu0 0
        %625 = vmatpush1.bf16.msra.mxu0 %v536
        %626 = vmatprep.subr.bf16.mxu0 0
        %627 = vmatpush1.bf16.msra.mxu0 %v533
        %628 = vmatprep.subr.bf16.mxu0 0
        %629 = vmatpush1.bf16.msra.mxu0 %v530
        %630 = vmatprep.subr.bf16.mxu0 0
        %631 = vmatpush1.bf16.msra.mxu0 %v527
        %632 = vmatprep.subr.bf16.mxu0 0
        %633 = vmatpush2.bf16.msra.mxu0 0
        %634 = vmatprep.subr.bf16.mxu0 0
        %635 = vmatpush2.bf16.msra.mxu0 0
        %636 = vmatprep.subr.bf16.mxu0 0
        %637 = vmatpush2.bf16.msra.mxu0 0
        %638 = vmatprep.subr.bf16.mxu0 0
        %639 = vmatpush2.bf16.msra.mxu0 0
        %640 = vmatprep.subr.bf16.mxu0 0
        %641 = vmatpush2.bf16.msra.mxu0 0
        %642 = vmatprep.subr.bf16.mxu0 0
        %643 = vmatpush2.bf16.msra.mxu0 0
        %644 = vmatprep.subr.bf16.mxu0 0
        %645 = vmatpush2.bf16.msra.mxu0 0
        %646 = vmatprep.subr.bf16.mxu0 0
        %647 = vmatpush2.bf16.msra.mxu0 0
        %648 = vmatprep.mubr.bf16.mxu0 0
        %649 = vmatmul.mubr.bf16.gmra.mxu0 %v412
        %v650 = vpop.f32.mrf.mxu0
        %v651 = vadd.f32 0.0, %v650
        %v652 = vpop.f32.mrf.mxu0
        %v653 = vpop.f32.mrf.mxu0
        %v654 = vadd.f32 0.0, %v653
        %v655 = vpop.f32.mrf.mxu0
        %656 = vdwg.mxu0
        %v657 = vld [vmem:[%s7] sm:$0xff]
        %v658 = vld [vmem:[%s7 + $0x8] sm:$0xff]
        %v659 = vld [vmem:[%s8] sm:$0xff]
        %v660 = vld [vmem:[%s8 + $0x8] sm:$0xff]
        %v661 = vmul.f32 %v608, %v657
        %v662 = vmul.f32 %v612, %v658
        %vm663 = vcmask 1048064
        %664 = vrot.lane.b32.xlu0 %v608, 64
        %v665 = vpop.permute.xlu0 %664
        %v666 = vsel %vm663, %v665, %v608
        %667 = vrot.lane.b32.xlu0 %v612, 64
        %v668 = vpop.permute.xlu0 %667
        %v669 = vsel %vm663, %v668, %v612
        %670 = vrot.lane.b32.xlu0 %v666, 64
        %v671 = vpop.permute.xlu0 %670
        %672 = vrot.lane.b32.xlu0 %v669, 64
        %v673 = vpop.permute.xlu0 %672
        %v674 = vsel %vm663, %v671, %v608
        %v675 = vsel %vm663, %v673, %v612
        %678 = vrot.lane.b32.xlu0 %v659, 32
        %v679 = vpop.permute.xlu0 %678
        %680 = vrot.lane.b32.xlu0 %v660, 32
        %v681 = vpop.permute.xlu0 %680
        %v684 = vmul.f32 %v674, %v679
        %v685 = vmul.f32 %v675, %v681
        %688 = vrot.lane.b32.xlu0 %v684, 96
        %v689 = vpop.permute.xlu0 %688
        %690 = vrot.lane.b32.xlu0 %v685, 96
        %v691 = vpop.permute.xlu0 %690
        %v694 = vadd.f32 %v661, %v689
        %v695 = vadd.f32 %v662, %v691
        %v696 = vpack.c.bf16 %v695, %v694
        %v697 = vmul.f32 %v610, %v657
        %v698 = vmul.f32 %v614, %v658
        %699 = vrot.lane.b32.xlu0 %v610, 64
        %v700 = vpop.permute.xlu0 %699
        %v701 = vsel %vm663, %v700, %v610
        %702 = vrot.lane.b32.xlu0 %v614, 64
        %v703 = vpop.permute.xlu0 %702
        %v704 = vsel %vm663, %v703, %v614
        %705 = vrot.lane.b32.xlu0 %v701, 64
        %v706 = vpop.permute.xlu0 %705
        %707 = vrot.lane.b32.xlu0 %v704, 64
        %v708 = vpop.permute.xlu0 %707
        %v709 = vsel %vm663, %v706, %v610
        %v710 = vsel %vm663, %v708, %v614
        %v711 = vmul.f32 %v709, %v679
        %v712 = vmul.f32 %v710, %v681
        %715 = vrot.lane.b32.xlu0 %v711, 96
        %v716 = vpop.permute.xlu0 %715
        %717 = vrot.lane.b32.xlu0 %v712, 96
        %v718 = vpop.permute.xlu0 %717
        %v721 = vadd.f32 %v697, %v716
        %v722 = vadd.f32 %v698, %v718
        %v723 = vpack.c.bf16 %v722, %v721
        %v724 = vpack.c.bf16 %v654, %v651
        %vm725 = vcmask 523264
        %v727 = vsel %vm725, %v696, 0
        %v730 = vsel %vm725, %v723, 0
        %732 = vmatprep.subr.bf16.mxu0 0
        %733 = vmatpush1.bf16.xpose.msra.mxu0 0
        %734 = vmatprep.subr.bf16.mxu0 0
        %735 = vmatpush1.bf16.xpose.msra.mxu0 0
        %736 = vmatprep.subr.bf16.mxu0 0
        %737 = vmatpush1.bf16.xpose.msra.mxu0 0
        %738 = vmatprep.subr.bf16.mxu0 0
        %739 = vmatpush1.bf16.xpose.msra.mxu0 0
        %740 = vmatprep.subr.bf16.mxu0 0
        %741 = vmatpush1.bf16.xpose.msra.mxu0 0
        %742 = vmatprep.subr.bf16.mxu0 0
        %743 = vmatpush1.bf16.xpose.msra.mxu0 0
        %744 = vmatprep.subr.bf16.mxu0 0
        %745 = vmatpush1.bf16.xpose.msra.mxu0 0
        %746 = vmatprep.subr.bf16.mxu0 0
        %747 = vmatpush1.bf16.xpose.msra.mxu0 %v730
        %748 = vmatprep.subr.bf16.mxu0 0
        %749 = vmatpush2.bf16.xpose.msra.mxu0 0
        %750 = vmatprep.subr.bf16.mxu0 0
        %751 = vmatpush2.bf16.xpose.msra.mxu0 0
        %752 = vmatprep.subr.bf16.mxu0 0
        %753 = vmatpush2.bf16.xpose.msra.mxu0 0
        %754 = vmatprep.subr.bf16.mxu0 0
        %755 = vmatpush2.bf16.xpose.msra.mxu0 0
        %756 = vmatprep.subr.bf16.mxu0 0
        %757 = vmatpush2.bf16.xpose.msra.mxu0 0
        %758 = vmatprep.subr.bf16.mxu0 0
        %759 = vmatpush2.bf16.xpose.msra.mxu0 0
        %760 = vmatprep.subr.bf16.mxu0 0
        %761 = vmatpush2.bf16.xpose.msra.mxu0 0
        %762 = vmatprep.subr.bf16.mxu0 0
        %763 = vmatpush2.bf16.xpose.msra.mxu0 0
        %764 = vmatprep.mubr.bf16.mxu0 0
        %765 = vmatmul.mubr.bf16.gmra.mxu0 %v727
        %v766 = vpop.f32.mrf.mxu0
        %v767 = vadd.f32 0.0, %v766
        %v768 = vpop.f32.mrf.mxu0
        %v769 = vpop.f32.mrf.mxu0
        %v770 = vadd.f32 0.0, %v769
        %v771 = vpop.f32.mrf.mxu0
        %772 = vdwg.mxu0
        %v773 = vmul.f32 %v767, 0.125
        %v774 = vmul.f32 %v770, 0.125
        %vm775 = vcmask 130048
        %v776 = vsel %vm775, %v773, -inf
        %777 = vmax.xlane.f32.xlu0 %v776
        %v778 = vpop.xlane.xlu0 %777
        %v779 = vsel %vm775, %v774, -inf
        %780 = vmax.xlane.f32.xlu0 %v779
        %v781 = vpop.xlane.xlu0 %780
        %v782 = vsub.f32 %v773, %v778
        %v783 = vsub.f32 %v774, %v781
        %v784 = vmul.f32 %v782, 1.442695
        %v785 = vpow.pop %v784
        %v786 = vmul.f32 %v783, 1.442695
        %v787 = vpow.pop %v786
        %v788 = vsel %vm775, %v785, 0.0
        %789 = vadd.xlane.f32.xlu0 %v788
        %v790 = vpop.xlane.xlu0 %789
        %v791 = vsel %vm775, %v787, 0.0
        %792 = vadd.xlane.f32.xlu0 %v791
        %v793 = vpop.xlane.xlu0 %792
        %v794 = vrcp.pop %v790
        %v795 = vrcp.pop %v793
        %v796 = vmul.f32 %v785, %v794
        %v797 = vmul.f32 %v787, %v795
        %v798 = vpack.c.bf16 %v797, %v796
        %v800 = vsel %vm775, %v798, 0
        %802 = vmatprep.subr.bf16.mxu0 0
        %803 = vmatpush1.bf16.msra.mxu0 0
        %804 = vmatprep.subr.bf16.mxu0 0
        %805 = vmatpush1.bf16.msra.mxu0 0
        %806 = vmatprep.subr.bf16.mxu0 0
        %807 = vmatpush1.bf16.msra.mxu0 0
        %808 = vmatprep.subr.bf16.mxu0 0
        %809 = vmatpush1.bf16.msra.mxu0 0
        %810 = vmatprep.subr.bf16.mxu0 0
        %811 = vmatpush1.bf16.msra.mxu0 0
        %812 = vmatprep.subr.bf16.mxu0 0
        %813 = vmatpush1.bf16.msra.mxu0 0
        %814 = vmatprep.subr.bf16.mxu0 0
        %815 = vmatpush1.bf16.msra.mxu0 0
        %816 = vmatprep.subr.bf16.mxu0 0
        %817 = vmatpush1.bf16.msra.mxu0 %v724
        %818 = vmatprep.subr.bf16.mxu0 0
        %819 = vmatpush2.bf16.msra.mxu0 0
        %820 = vmatprep.subr.bf16.mxu0 0
        %821 = vmatpush2.bf16.msra.mxu0 0
        %822 = vmatprep.subr.bf16.mxu0 0
        %823 = vmatpush2.bf16.msra.mxu0 0
        %824 = vmatprep.subr.bf16.mxu0 0
        %825 = vmatpush2.bf16.msra.mxu0 0
        %826 = vmatprep.subr.bf16.mxu0 0
        %827 = vmatpush2.bf16.msra.mxu0 0
        %828 = vmatprep.subr.bf16.mxu0 0
        %829 = vmatpush2.bf16.msra.mxu0 0
        %830 = vmatprep.subr.bf16.mxu0 0
        %831 = vmatpush2.bf16.msra.mxu0 0
        %832 = vmatprep.subr.bf16.mxu0 0
        %833 = vmatpush2.bf16.msra.mxu0 0
        %834 = vmatprep.mubr.bf16.mxu0 0
        %835 = vmatmul.mubr.bf16.gmra.mxu0 %v800
        %v836 = vpop.f32.mrf.mxu0
        %v837 = vadd.f32 0.0, %v836
        %v838 = vpop.f32.mrf.mxu0
        %v839 = vpop.f32.mrf.mxu0
        %v840 = vadd.f32 0.0, %v839
        %v841 = vpop.f32.mrf.mxu0
        %842 = vdwg.mxu0
        %843 = vst.msk [vmem:[#allocation2] sm:$0xff] %vm725, %v837
        %844 = vst.msk [vmem:[#allocation2 + $0x8] sm:$0xff] %vm725, %v840
        %847 = vrot.lane.b32.xlu0 %v657, 64
        %v848 = vpop.permute.xlu0 %847
        %849 = vrot.lane.b32.xlu0 %v658, 64
        %v850 = vpop.permute.xlu0 %849
        %v853 = vmul.f32 %v608, %v848
        %v854 = vmul.f32 %v612, %v850
        %857 = vrot.lane.b32.xlu0 %v608, 64
        %v858 = vpop.permute.xlu0 %857
        %859 = vrot.lane.b32.xlu0 %v612, 64
        %v860 = vpop.permute.xlu0 %859
        %863 = vrot.lane.b32.xlu0 %v858, 64
        %v864 = vpop.permute.xlu0 %863
        %v865 = vsel %vm663, %v864, %v858
        %866 = vrot.lane.b32.xlu0 %v860, 64
        %v867 = vpop.permute.xlu0 %866
        %v868 = vsel %vm663, %v867, %v860
        %869 = vrot.lane.b32.xlu0 %v865, 64
        %v870 = vpop.permute.xlu0 %869
        %871 = vrot.lane.b32.xlu0 %v868, 64
        %v872 = vpop.permute.xlu0 %871
        %v873 = vsel %vm663, %v870, %v858
        %v874 = vsel %vm663, %v872, %v860
        %v875 = vmul.f32 %v873, %v679
        %v876 = vmul.f32 %v874, %v681
        %879 = vrot.lane.b32.xlu0 %v875, 32
        %v880 = vpop.permute.xlu0 %879
        %881 = vrot.lane.b32.xlu0 %v876, 32
        %v882 = vpop.permute.xlu0 %881
        %v885 = vadd.f32 %v853, %v880
        %v886 = vadd.f32 %v854, %v882
        %v887 = vpack.c.bf16 %v886, %v885
        %v888 = vmul.f32 %v610, %v848
        %v889 = vmul.f32 %v614, %v850
        %892 = vrot.lane.b32.xlu0 %v610, 64
        %v893 = vpop.permute.xlu0 %892
        %894 = vrot.lane.b32.xlu0 %v614, 64
        %v895 = vpop.permute.xlu0 %894
        %898 = vrot.lane.b32.xlu0 %v893, 64
        %v899 = vpop.permute.xlu0 %898
        %v900 = vsel %vm663, %v899, %v893
        %901 = vrot.lane.b32.xlu0 %v895, 64
        %v902 = vpop.permute.xlu0 %901
        %v903 = vsel %vm663, %v902, %v895
        %904 = vrot.lane.b32.xlu0 %v900, 64
        %v905 = vpop.permute.xlu0 %904
        %906 = vrot.lane.b32.xlu0 %v903, 64
        %v907 = vpop.permute.xlu0 %906
        %v908 = vsel %vm663, %v905, %v893
        %v909 = vsel %vm663, %v907, %v895
        %v910 = vmul.f32 %v908, %v679
        %v911 = vmul.f32 %v909, %v681
        %914 = vrot.lane.b32.xlu0 %v910, 32
        %v915 = vpop.permute.xlu0 %914
        %916 = vrot.lane.b32.xlu0 %v911, 32
        %v917 = vpop.permute.xlu0 %916
        %v920 = vadd.f32 %v888, %v915
        %v921 = vadd.f32 %v889, %v917
        %v922 = vpack.c.bf16 %v921, %v920
        %924 = vrot.lane.b32.xlu0 %v887, 64
        %v925 = vpop.permute.xlu0 %924
        %927 = vrot.lane.b32.xlu0 %v922, 64
        %v928 = vpop.permute.xlu0 %927
        %v930 = vsel %vm725, %v925, 0
        %v933 = vsel %vm725, %v928, 0
        %935 = vmatprep.subr.bf16.mxu0 0
        %936 = vmatpush1.bf16.xpose.msra.mxu0 0
        %937 = vmatprep.subr.bf16.mxu0 0
        %938 = vmatpush1.bf16.xpose.msra.mxu0 0
        %939 = vmatprep.subr.bf16.mxu0 0
        %940 = vmatpush1.bf16.xpose.msra.mxu0 0
        %941 = vmatprep.subr.bf16.mxu0 0
        %942 = vmatpush1.bf16.xpose.msra.mxu0 0
        %943 = vmatprep.subr.bf16.mxu0 0
        %944 = vmatpush1.bf16.xpose.msra.mxu0 0
        %945 = vmatprep.subr.bf16.mxu0 0
        %946 = vmatpush1.bf16.xpose.msra.mxu0 0
        %947 = vmatprep.subr.bf16.mxu0 0
        %948 = vmatpush1.bf16.xpose.msra.mxu0 0
        %949 = vmatprep.subr.bf16.mxu0 0
        %950 = vmatpush1.bf16.xpose.msra.mxu0 %v933
        %951 = vmatprep.subr.bf16.mxu0 0
        %952 = vmatpush2.bf16.xpose.msra.mxu0 0
        %953 = vmatprep.subr.bf16.mxu0 0
        %954 = vmatpush2.bf16.xpose.msra.mxu0 0
        %955 = vmatprep.subr.bf16.mxu0 0
        %956 = vmatpush2.bf16.xpose.msra.mxu0 0
        %957 = vmatprep.subr.bf16.mxu0 0
        %958 = vmatpush2.bf16.xpose.msra.mxu0 0
        %959 = vmatprep.subr.bf16.mxu0 0
        %960 = vmatpush2.bf16.xpose.msra.mxu0 0
        %961 = vmatprep.subr.bf16.mxu0 0
        %962 = vmatpush2.bf16.xpose.msra.mxu0 0
        %963 = vmatprep.subr.bf16.mxu0 0
        %964 = vmatpush2.bf16.xpose.msra.mxu0 0
        %965 = vmatprep.subr.bf16.mxu0 0
        %966 = vmatpush2.bf16.xpose.msra.mxu0 0
        %967 = vmatprep.mubr.bf16.mxu0 0
        %968 = vmatmul.mubr.bf16.gmra.mxu0 %v930
        %v969 = vpop.f32.mrf.mxu0
        %v970 = vadd.f32 0.0, %v969
        %v971 = vpop.f32.mrf.mxu0
        %v972 = vpop.f32.mrf.mxu0
        %v973 = vadd.f32 0.0, %v972
        %v974 = vpop.f32.mrf.mxu0
        %975 = vdwg.mxu0
        %v976 = vmul.f32 %v970, 0.125
        %v977 = vmul.f32 %v973, 0.125
        %v978 = vsel %vm775, %v976, -inf
        %979 = vmax.xlane.f32.xlu0 %v978
        %v980 = vpop.xlane.xlu0 %979
        %v981 = vsel %vm775, %v977, -inf
        %982 = vmax.xlane.f32.xlu0 %v981
        %v983 = vpop.xlane.xlu0 %982
        %v984 = vsub.f32 %v976, %v980
        %v985 = vsub.f32 %v977, %v983
        %v986 = vmul.f32 %v984, 1.442695
        %v987 = vpow.pop %v986
        %v988 = vmul.f32 %v985, 1.442695
        %v989 = vpow.pop %v988
        %v990 = vsel %vm775, %v987, 0.0
        %991 = vadd.xlane.f32.xlu0 %v990
        %v992 = vpop.xlane.xlu0 %991
        %v993 = vsel %vm775, %v989, 0.0
        %994 = vadd.xlane.f32.xlu0 %v993
        %v995 = vpop.xlane.xlu0 %994
        %v996 = vrcp.pop %v992
        %v997 = vrcp.pop %v995
        %v998 = vmul.f32 %v987, %v996
        %v999 = vmul.f32 %v989, %v997
        %v1000 = vpack.c.bf16 %v999, %v998
        %1002 = vrot.lane.b32.xlu0 %v724, 64
        %v1003 = vpop.permute.xlu0 %1002
        %v1006 = vsel %vm775, %v1000, 0
        %1008 = vmatprep.subr.bf16.mxu0 0
        %1009 = vmatpush1.bf16.msra.mxu0 0
        %1010 = vmatprep.subr.bf16.mxu0 0
        %1011 = vmatpush1.bf16.msra.mxu0 0
        %1012 = vmatprep.subr.bf16.mxu0 0
        %1013 = vmatpush1.bf16.msra.mxu0 0
        %1014 = vmatprep.subr.bf16.mxu0 0
        %1015 = vmatpush1.bf16.msra.mxu0 0
        %1016 = vmatprep.subr.bf16.mxu0 0
        %1017 = vmatpush1.bf16.msra.mxu0 0
        %1018 = vmatprep.subr.bf16.mxu0 0
        %1019 = vmatpush1.bf16.msra.mxu0 0
        %1020 = vmatprep.subr.bf16.mxu0 0
        %1021 = vmatpush1.bf16.msra.mxu0 0
        %1022 = vmatprep.subr.bf16.mxu0 0
        %1023 = vmatpush1.bf16.msra.mxu0 %v1003
        %1024 = vmatprep.subr.bf16.mxu0 0
        %1025 = vmatpush2.bf16.msra.mxu0 0
        %1026 = vmatprep.subr.bf16.mxu0 0
        %1027 = vmatpush2.bf16.msra.mxu0 0
        %1028 = vmatprep.subr.bf16.mxu0 0
        %1029 = vmatpush2.bf16.msra.mxu0 0
        %1030 = vmatprep.subr.bf16.mxu0 0
        %1031 = vmatpush2.bf16.msra.mxu0 0
        %1032 = vmatprep.subr.bf16.mxu0 0
        %1033 = vmatpush2.bf16.msra.mxu0 0
        %1034 = vmatprep.subr.bf16.mxu0 0
        %1035 = vmatpush2.bf16.msra.mxu0 0
        %1036 = vmatprep.subr.bf16.mxu0 0
        %1037 = vmatpush2.bf16.msra.mxu0 0
        %1038 = vmatprep.subr.bf16.mxu0 0
        %1039 = vmatpush2.bf16.msra.mxu0 0
        %1040 = vmatprep.mubr.bf16.mxu0 0
        %1041 = vmatmul.mubr.bf16.gmra.mxu0 %v1006
        %v1042 = vpop.f32.mrf.mxu0
        %v1043 = vadd.f32 0.0, %v1042
        %v1044 = vpop.f32.mrf.mxu0
        %v1045 = vpop.f32.mrf.mxu0
        %v1046 = vadd.f32 0.0, %v1045
        %v1047 = vpop.f32.mrf.mxu0
        %1048 = vdwg.mxu0
        %1051 = vrot.lane.b32.xlu0 %v1043, 64
        %v1052 = vpop.permute.xlu0 %1051
        %1053 = vrot.lane.b32.xlu0 %v1046, 64
        %v1054 = vpop.permute.xlu0 %1053
        %1057 = vst.msk [vmem:[#allocation2] sm:$0xff] %vm663, %v1052
        %1058 = vst.msk [vmem:[#allocation2 + $0x8] sm:$0xff] %vm663, %v1054
        %v1059 = vld [vmem:[#allocation2] sm:$0xff]
        %v1060 = vld [vmem:[#allocation2 + $0x8] sm:$0xff]
        %v1061 = vpack.c.bf16 %v1060, %v1059
        %v1062 = vld [vmem:[%s4] sm:$0xf]
        %v1063 = vld [vmem:[%s4 + $0x4] sm:$0xf]
        %v1064 = vld [vmem:[%s4 + $0x8] sm:$0xf]
        %v1065 = vld [vmem:[%s4 + $0xc] sm:$0xf]
        %v1066 = vld [vmem:[%s4 + $0x10] sm:$0xf]
        %v1067 = vld [vmem:[%s4 + $0x14] sm:$0xf]
        %v1068 = vld [vmem:[%s4 + $0x18] sm:$0xf]
        %v1069 = vld [vmem:[%s4 + $0x1c] sm:$0xf]
        %v1070 = vld [vmem:[%s4 + $0x20] sm:$0xf]
        %v1071 = vld [vmem:[%s4 + $0x24] sm:$0xf]
        %v1072 = vld [vmem:[%s4 + $0x28] sm:$0xf]
        %v1073 = vld [vmem:[%s4 + $0x2c] sm:$0xf]
        %v1074 = vld [vmem:[%s4 + $0x30] sm:$0xf]
        %v1075 = vld [vmem:[%s4 + $0x34] sm:$0xf]
        %v1076 = vld [vmem:[%s4 + $0x38] sm:$0xf]
        %v1077 = vld [vmem:[%s4 + $0x3c] sm:$0xf]
        %v1094 = vunpack.c.l.b16 %v1062
        %v1095 = vunpack.c.l.b16 %v1063
        %v1096 = vunpack.c.l.b16 %v1064
        %v1097 = vunpack.c.l.b16 %v1065
        %v1098 = vunpack.c.l.b16 %v1066
        %v1099 = vunpack.c.l.b16 %v1067
        %v1100 = vunpack.c.l.b16 %v1068
        %v1101 = vunpack.c.l.b16 %v1069
        %v1102 = vunpack.c.l.b16 %v1070
        %v1103 = vunpack.c.l.b16 %v1071
        %v1104 = vunpack.c.l.b16 %v1072
        %v1105 = vunpack.c.l.b16 %v1073
        %v1106 = vunpack.c.l.b16 %v1074
        %v1107 = vunpack.c.l.b16 %v1075
        %v1108 = vunpack.c.l.b16 %v1076
        %v1109 = vunpack.c.l.b16 %v1077
        %v1110 = vpack.c.b16 %v1095, %v1094
        %v1111 = vpack.c.b16 %v1097, %v1096
        %v1112 = vpack.c.b16 %v1099, %v1098
        %v1113 = vpack.c.b16 %v1101, %v1100
        %v1114 = vpack.c.b16 %v1103, %v1102
        %v1115 = vpack.c.b16 %v1105, %v1104
        %v1116 = vpack.c.b16 %v1107, %v1106
        %v1117 = vpack.c.b16 %v1109, %v1108
        %1126 = vmatprep.subr.bf16.mxu0 0
        %1127 = vmatpush1.bf16.msra.mxu0 %v1117
        %1128 = vmatprep.subr.bf16.mxu0 0
        %1129 = vmatpush1.bf16.msra.mxu0 %v1116
        %1130 = vmatprep.subr.bf16.mxu0 0
        %1131 = vmatpush1.bf16.msra.mxu0 %v1115
        %1132 = vmatprep.subr.bf16.mxu0 0
        %1133 = vmatpush1.bf16.msra.mxu0 %v1114
        %1134 = vmatprep.subr.bf16.mxu0 0
        %1135 = vmatpush1.bf16.msra.mxu0 %v1113
        %1136 = vmatprep.subr.bf16.mxu0 0
        %1137 = vmatpush1.bf16.msra.mxu0 %v1112
        %1138 = vmatprep.subr.bf16.mxu0 0
        %1139 = vmatpush1.bf16.msra.mxu0 %v1111
        %1140 = vmatprep.subr.bf16.mxu0 0
        %1141 = vmatpush1.bf16.msra.mxu0 %v1110
        %1142 = vmatprep.subr.bf16.mxu0 0
        %1143 = vmatpush2.bf16.msra.mxu0 0
        %1144 = vmatprep.subr.bf16.mxu0 0
        %1145 = vmatpush2.bf16.msra.mxu0 0
        %1146 = vmatprep.subr.bf16.mxu0 0
        %1147 = vmatpush2.bf16.msra.mxu0 0
        %1148 = vmatprep.subr.bf16.mxu0 0
        %1149 = vmatpush2.bf16.msra.mxu0 0
        %1150 = vmatprep.subr.bf16.mxu0 0
        %1151 = vmatpush2.bf16.msra.mxu0 0
        %1152 = vmatprep.subr.bf16.mxu0 0
        %1153 = vmatpush2.bf16.msra.mxu0 0
        %1154 = vmatprep.subr.bf16.mxu0 0
        %1155 = vmatpush2.bf16.msra.mxu0 0
        %1156 = vmatprep.subr.bf16.mxu0 0
        %1157 = vmatpush2.bf16.msra.mxu0 0
        %1158 = vmatprep.mubr.bf16.mxu0 0
        %1159 = vmatmul.mubr.bf16.gmra.mxu0 %v1061
        %v1160 = vpop.f32.mrf.mxu0
        %v1161 = vadd.f32 0.0, %v1160
        %v1162 = vpop.f32.mrf.mxu0
        %v1163 = vpop.f32.mrf.mxu0
        %v1164 = vadd.f32 0.0, %v1163
        %v1165 = vpop.f32.mrf.mxu0
        %1166 = vdwg.mxu0
        %s1167 = sld [smem:[#allocation3]]
        %v1168 = vstv %s1167
        %v1169 = vmul.f32 %v1168, %v1161
        %v1170 = vmul.f32 %v1168, %v1164
        %v1171 = vadd.f32 %v373, %v1169
        %v1172 = vadd.f32 %v374, %v1170
        %v1173 = vmul.f32 %v1171, %v1171
        %v1174 = vmul.f32 %v1172, %v1172
        %1175 = vadd.xlane.f32.xlu0 %v1173
        %v1176 = vpop.xlane.xlu0 %1175
        %1177 = vadd.xlane.f32.xlu0 %v1174
        %v1178 = vpop.xlane.xlu0 %1177
        %v1179 = vrsqrt.pop %v1176
        %v1180 = vmul.f32 %v1176, %v1179
        %vm1181 = vcmp.eq.f32.partialorder %v1176, inf
        %v1182 = vsel %vm1181, %v1176, %v1180
        %vm1183 = vcmp.eq.f32.partialorder %v1176, 0.0
        %v1184 = vand.u32 %v1176, 2147483648
        %v1185 = vsel %vm1183, %v1184, %v1182
        %v1186 = vrsqrt.pop %v1178
        %v1187 = vmul.f32 %v1178, %v1186
        %vm1188 = vcmp.eq.f32.partialorder %v1178, inf
        %v1189 = vsel %vm1188, %v1178, %v1187
        %vm1190 = vcmp.eq.f32.partialorder %v1178, 0.0
        %v1191 = vand.u32 %v1178, 2147483648
        %v1192 = vsel %vm1190, %v1191, %v1189
        %v1193 = vmul.f32 %v1185, 0.088388346
        %v1194 = vmul.f32 %v1192, 0.088388346
        %v1195 = vadd.f32 %v1193, 1e-06
        %v1196 = vadd.f32 %v1194, 1e-06
        %v1197 = vrcp.pop %v1195
        %v1198 = vmul.f32 %v1171, %v1197
        %v1199 = vrcp.pop %v1196
        %v1200 = vmul.f32 %v1172, %v1199
        %v1201 = vld [vmem:[%s2] sm:$0x1]
        %v1203 = vlaneseq
        %v1204 = vshrl.u32 %v1203, 7
        %v1205 = vsub.s32 0, %v1204
        %v1206 = vrot.slane %v1201, %v1205
        %v1208 = vmul.f32 %v1198, %v1206
        %v1209 = vmul.f32 %v1200, %v1206
        %v1210 = vpack.c.bf16 %v1209, %v1208
        %v1211 = vld [vmem:[%s5] sm:$0xff]
        %v1212 = vld [vmem:[%s5 + $0x8] sm:$0xff]
        %v1213 = vld [vmem:[%s5 + $0x10] sm:$0xff]
        %v1214 = vld [vmem:[%s5 + $0x18] sm:$0xff]
        %v1215 = vld [vmem:[%s5 + $0x20] sm:$0xff]
        %v1216 = vld [vmem:[%s5 + $0x28] sm:$0xff]
        %v1217 = vld [vmem:[%s5 + $0x30] sm:$0xff]
        %v1218 = vld [vmem:[%s5 + $0x38] sm:$0xff]
        %v1219 = vld [vmem:[%s5 + $0x40] sm:$0xff]
        %v1220 = vld [vmem:[%s5 + $0x48] sm:$0xff]
        %v1221 = vld [vmem:[%s5 + $0x50] sm:$0xff]
        %v1222 = vld [vmem:[%s5 + $0x58] sm:$0xff]
        %v1223 = vld [vmem:[%s5 + $0x60] sm:$0xff]
        %v1224 = vld [vmem:[%s5 + $0x68] sm:$0xff]
        %v1225 = vld [vmem:[%s5 + $0x70] sm:$0xff]
        %v1226 = vld [vmem:[%s5 + $0x78] sm:$0xff]
        %v1243 = vunpack.c.l.b16 %v1211
        %v1244 = vunpack.c.h.b16 %v1211
        %v1245 = vunpack.c.l.b16 %v1212
        %v1246 = vunpack.c.h.b16 %v1212
        %v1247 = vunpack.c.l.b16 %v1213
        %v1248 = vunpack.c.h.b16 %v1213
        %v1249 = vunpack.c.l.b16 %v1214
        %v1250 = vunpack.c.h.b16 %v1214
        %v1251 = vunpack.c.l.b16 %v1215
        %v1252 = vunpack.c.h.b16 %v1215
        %v1253 = vunpack.c.l.b16 %v1216
        %v1254 = vunpack.c.h.b16 %v1216
        %v1255 = vunpack.c.l.b16 %v1217
        %v1256 = vunpack.c.h.b16 %v1217
        %v1257 = vunpack.c.l.b16 %v1218
        %v1258 = vunpack.c.h.b16 %v1218
        %v1259 = vunpack.c.l.b16 %v1219
        %v1260 = vunpack.c.h.b16 %v1219
        %v1261 = vunpack.c.l.b16 %v1220
        %v1262 = vunpack.c.h.b16 %v1220
        %v1263 = vunpack.c.l.b16 %v1221
        %v1264 = vunpack.c.h.b16 %v1221
        %v1265 = vunpack.c.l.b16 %v1222
        %v1266 = vunpack.c.h.b16 %v1222
        %v1267 = vunpack.c.l.b16 %v1223
        %v1268 = vunpack.c.h.b16 %v1223
        %v1269 = vunpack.c.l.b16 %v1224
        %v1270 = vunpack.c.h.b16 %v1224
        %v1271 = vunpack.c.l.b16 %v1225
        %v1272 = vunpack.c.h.b16 %v1225
        %v1273 = vunpack.c.l.b16 %v1226
        %v1274 = vunpack.c.h.b16 %v1226
        %v1275 = vpack.c.b16 %v1245, %v1243
        %v1276 = vpack.c.b16 %v1246, %v1244
        %v1277 = vpack.c.b16 %v1249, %v1247
        %v1278 = vpack.c.b16 %v1250, %v1248
        %v1279 = vpack.c.b16 %v1253, %v1251
        %v1280 = vpack.c.b16 %v1254, %v1252
        %v1281 = vpack.c.b16 %v1257, %v1255
        %v1282 = vpack.c.b16 %v1258, %v1256
        %v1283 = vpack.c.b16 %v1261, %v1259
        %v1284 = vpack.c.b16 %v1262, %v1260
        %v1285 = vpack.c.b16 %v1265, %v1263
        %v1286 = vpack.c.b16 %v1266, %v1264
        %v1287 = vpack.c.b16 %v1269, %v1267
        %v1288 = vpack.c.b16 %v1270, %v1268
        %v1289 = vpack.c.b16 %v1273, %v1271
        %v1290 = vpack.c.b16 %v1274, %v1272
        %1307 = vmatprep.subr.bf16.mxu0 %v1290
        %1308 = vmatpush1.bf16.msra.mxu0 %v1289
        %1309 = vmatprep.subr.bf16.mxu0 %v1288
        %1310 = vmatpush1.bf16.msra.mxu0 %v1287
        %1311 = vmatprep.subr.bf16.mxu0 %v1286
        %1312 = vmatpush1.bf16.msra.mxu0 %v1285
        %1313 = vmatprep.subr.bf16.mxu0 %v1284
        %1314 = vmatpush1.bf16.msra.mxu0 %v1283
        %1315 = vmatprep.subr.bf16.mxu0 %v1282
        %1316 = vmatpush1.bf16.msra.mxu0 %v1281
        %1317 = vmatprep.subr.bf16.mxu0 %v1280
        %1318 = vmatpush1.bf16.msra.mxu0 %v1279
        %1319 = vmatprep.subr.bf16.mxu0 %v1278
        %1320 = vmatpush1.bf16.msra.mxu0 %v1277
        %1321 = vmatprep.subr.bf16.mxu0 %v1276
        %1322 = vmatpush1.bf16.msra.mxu0 %v1275
        %1323 = vmatprep.subr.bf16.mxu0 0
        %1324 = vmatpush2.bf16.msra.mxu0 0
        %1325 = vmatprep.subr.bf16.mxu0 0
        %1326 = vmatpush2.bf16.msra.mxu0 0
        %1327 = vmatprep.subr.bf16.mxu0 0
        %1328 = vmatpush2.bf16.msra.mxu0 0
        %1329 = vmatprep.subr.bf16.mxu0 0
        %1330 = vmatpush2.bf16.msra.mxu0 0
        %1331 = vmatprep.subr.bf16.mxu0 0
        %1332 = vmatpush2.bf16.msra.mxu0 0
        %1333 = vmatprep.subr.bf16.mxu0 0
        %1334 = vmatpush2.bf16.msra.mxu0 0
        %1335 = vmatprep.subr.bf16.mxu0 0
        %1336 = vmatpush2.bf16.msra.mxu0 0
        %1337 = vmatprep.subr.bf16.mxu0 0
        %1338 = vmatpush2.bf16.msra.mxu0 0
        %1339 = vmatprep.mubr.bf16.mxu0 0
        %1340 = vmatmul.mubr.bf16.gmra.mxu0 %v1210
        %v1341 = vpop.f32.mrf.mxu0
        %v1342 = vadd.f32 0.0, %v1341
        %v1343 = vpop.f32.mrf.mxu0
        %v1344 = vadd.f32 0.0, %v1343
        %v1345 = vpop.f32.mrf.mxu0
        %v1346 = vadd.f32 0.0, %v1345
        %v1347 = vpop.f32.mrf.mxu0
        %v1348 = vadd.f32 0.0, %v1347
        %1349 = vdwg.mxu0
        %v1350 = vxor.u32 %v1342, 2147483648
        %v1351 = vxor.u32 %v1346, 2147483648
        %v1352 = vmul.f32 %v1350, 1.442695
        %v1353 = vpow.pop %v1352
        %v1354 = vmul.f32 %v1351, 1.442695
        %v1355 = vpow.pop %v1354
        %v1356 = vadd.f32 %v1353, 1.0
        %v1357 = vadd.f32 %v1355, 1.0
        %v1358 = vrcp.pop %v1356
        %v1359 = vmul.f32 1.0, %v1358
        %v1360 = vrcp.pop %v1357
        %v1361 = vmul.f32 1.0, %v1360
        %v1362 = vmul.f32 %v1342, %v1359
        %v1363 = vmul.f32 %v1346, %v1361
        %v1364 = vmul.f32 %v1362, %v1344
        %v1365 = vmul.f32 %v1363, %v1348
        %v1366 = vpack.c.bf16 %v1365, %v1364
        %v1367 = vld [vmem:[%s6] sm:$0xf]
        %v1368 = vld [vmem:[%s6 + $0x4] sm:$0xf]
        %v1369 = vld [vmem:[%s6 + $0x8] sm:$0xf]
        %v1370 = vld [vmem:[%s6 + $0xc] sm:$0xf]
        %v1371 = vld [vmem:[%s6 + $0x10] sm:$0xf]
        %v1372 = vld [vmem:[%s6 + $0x14] sm:$0xf]
        %v1373 = vld [vmem:[%s6 + $0x18] sm:$0xf]
        %v1374 = vld [vmem:[%s6 + $0x1c] sm:$0xf]
        %v1375 = vld [vmem:[%s6 + $0x20] sm:$0xf]
        %v1376 = vld [vmem:[%s6 + $0x24] sm:$0xf]
        %v1377 = vld [vmem:[%s6 + $0x28] sm:$0xf]
        %v1378 = vld [vmem:[%s6 + $0x2c] sm:$0xf]
        %v1379 = vld [vmem:[%s6 + $0x30] sm:$0xf]
        %v1380 = vld [vmem:[%s6 + $0x34] sm:$0xf]
        %v1381 = vld [vmem:[%s6 + $0x38] sm:$0xf]
        %v1382 = vld [vmem:[%s6 + $0x3c] sm:$0xf]
        %v1399 = vunpack.c.l.b16 %v1367
        %v1400 = vunpack.c.l.b16 %v1368
        %v1401 = vunpack.c.l.b16 %v1369
        %v1402 = vunpack.c.l.b16 %v1370
        %v1403 = vunpack.c.l.b16 %v1371
        %v1404 = vunpack.c.l.b16 %v1372
        %v1405 = vunpack.c.l.b16 %v1373
        %v1406 = vunpack.c.l.b16 %v1374
        %v1407 = vunpack.c.l.b16 %v1375
        %v1408 = vunpack.c.l.b16 %v1376
        %v1409 = vunpack.c.l.b16 %v1377
        %v1410 = vunpack.c.l.b16 %v1378
        %v1411 = vunpack.c.l.b16 %v1379
        %v1412 = vunpack.c.l.b16 %v1380
        %v1413 = vunpack.c.l.b16 %v1381
        %v1414 = vunpack.c.l.b16 %v1382
        %v1415 = vpack.c.b16 %v1400, %v1399
        %v1416 = vpack.c.b16 %v1402, %v1401
        %v1417 = vpack.c.b16 %v1404, %v1403
        %v1418 = vpack.c.b16 %v1406, %v1405
        %v1419 = vpack.c.b16 %v1408, %v1407
        %v1420 = vpack.c.b16 %v1410, %v1409
        %v1421 = vpack.c.b16 %v1412, %v1411
        %v1422 = vpack.c.b16 %v1414, %v1413
        %1431 = vmatprep.subr.bf16.mxu0 0
        %1432 = vmatpush1.bf16.msra.mxu0 %v1422
        %1433 = vmatprep.subr.bf16.mxu0 0
        %1434 = vmatpush1.bf16.msra.mxu0 %v1421
        %1435 = vmatprep.subr.bf16.mxu0 0
        %1436 = vmatpush1.bf16.msra.mxu0 %v1420
        %1437 = vmatprep.subr.bf16.mxu0 0
        %1438 = vmatpush1.bf16.msra.mxu0 %v1419
        %1439 = vmatprep.subr.bf16.mxu0 0
        %1440 = vmatpush1.bf16.msra.mxu0 %v1418
        %1441 = vmatprep.subr.bf16.mxu0 0
        %1442 = vmatpush1.bf16.msra.mxu0 %v1417
        %1443 = vmatprep.subr.bf16.mxu0 0
        %1444 = vmatpush1.bf16.msra.mxu0 %v1416
        %1445 = vmatprep.subr.bf16.mxu0 0
        %1446 = vmatpush1.bf16.msra.mxu0 %v1415
        %1447 = vmatprep.subr.bf16.mxu0 0
        %1448 = vmatpush2.bf16.msra.mxu0 0
        %1449 = vmatprep.subr.bf16.mxu0 0
        %1450 = vmatpush2.bf16.msra.mxu0 0
        %1451 = vmatprep.subr.bf16.mxu0 0
        %1452 = vmatpush2.bf16.msra.mxu0 0
        %1453 = vmatprep.subr.bf16.mxu0 0
        %1454 = vmatpush2.bf16.msra.mxu0 0
        %1455 = vmatprep.subr.bf16.mxu0 0
        %1456 = vmatpush2.bf16.msra.mxu0 0
        %1457 = vmatprep.subr.bf16.mxu0 0
        %1458 = vmatpush2.bf16.msra.mxu0 0
        %1459 = vmatprep.subr.bf16.mxu0 0
        %1460 = vmatpush2.bf16.msra.mxu0 0
        %1461 = vmatprep.subr.bf16.mxu0 0
        %1462 = vmatpush2.bf16.msra.mxu0 0
        %1463 = vmatprep.mubr.bf16.mxu0 0
        %1464 = vmatmul.mubr.bf16.gmra.mxu0 %v1366
        %v1465 = vpop.f32.mrf.mxu0
        %v1466 = vadd.f32 0.0, %v1465
        %v1467 = vpop.f32.mrf.mxu0
        %v1468 = vpop.f32.mrf.mxu0
        %v1469 = vadd.f32 0.0, %v1468
        %v1470 = vpop.f32.mrf.mxu0
        %1471 = vdwg.mxu0
        %s1472 = sld [smem:[#allocation3 + $0x1]]
        %v1473 = vstv %s1472
        %v1474 = vmul.f32 %v1473, %v1466
        %v1475 = vmul.f32 %v1473, %v1469
        %v1476 = vadd.f32 %v1171, %v1474
        %v1477 = vadd.f32 %v1172, %v1475
        %1478 = vst [vmem:[%s366] sm:$0xff] %v1476
        %1479 = vst [vmem:[%s366 + $0x8] sm:$0xff] %v1477
        %s1480 = sand.u32 %s248, 1
        %s1481 = scalar_lea.sflag [#allocation4], %s1480
        %s1482 = sand.u32 %s248, 1
        %s1483 = smul.addr %s1482, 16
        %s1484 = scalar_lea.vmem [#allocation6], %s1483
        // Predicated region
        $region65: #{advanced_transformer_block.1} parent=59 // pred_check
          %p1485 = pneg %p258
        $region66: #{advanced_transformer_block.1} parent=59 // pred_check_branch
          %1487 = sbr.rel (%p1485) target = $region68
        $region67: #{advanced_transformer_block.1} parent=59 // pred_region
          %s1489 = ssub.s32 256, 256
          %1490 = vsyncadd %s1481, %s1489
          %s1491 = smul.addr %s25, 2
          %s1492 = smul.addr %s1491, 128
          %s1493 = scalar_lea.hbm %s10, %s1492
          %s1494 = sshll.u32 %s1484, 4
          %s1495 = int_to_ptr.vmem [resolvable:$true] %s1494
          %1500 = dma.vmem_to_hbm [thread:$0]  %s1495, 256, %s1493, %s1481, 128, 128, 8
        $region68: #{advanced_transformer_block.1} parent=59 // pred_fallthru
          _
      $region60: #{advanced_transformer_block.1} parent=5 // pred_fallthru
        _
      %p1501 = scmp.le.s32.totalorder 2, %s20
      // Predicated region
      $region69: #{advanced_transformer_block.1} parent=5 // pred_check
        %p1502 = pneg %p1501
      $region70: #{advanced_transformer_block.1} parent=5 // pred_check_branch
        %1504 = sbr.rel (%p1502) target = $region72
      $region71: #{advanced_transformer_block.1} parent=5 // pred_region
        %s1505 = ssub.s32 %s20, 2
        // Predicated region
        $region73: #{advanced_transformer_block.1} parent=71 // pred_check
          %p1506 = pneg %p264
        $region74: #{advanced_transformer_block.1} parent=71 // pred_check_branch
          %1508 = sbr.rel (%p1506) target = $region76
        $region75: #{advanced_transformer_block.1} parent=71 // pred_region
          %s1509 = sand.u32 %s249, 1
          %s1510 = scalar_lea.sflag [#allocation4], %s1509
          %s1511 = sand.u32 %s249, 1
          %s1512 = smul.addr %s1511, 16
          %s1513 = scalar_lea.vmem [#allocation6], %s1512
          %1514 = dma.done %s1510, 256
        $region76: #{advanced_transformer_block.1} parent=71 // pred_fallthru
          _
      $region72: #{advanced_transformer_block.1} parent=5 // pred_fallthru
        _
    $region6: #{advanced_transformer_block.1} parent=1 // loop_footer
      %s24 = sadd.s32 1, %s20
    $region7: #{advanced_transformer_block.1} parent=1 // loop_footer_branch
      %19 = sbr.rel target = $region3
    $region8: #{advanced_transformer_block.1} parent=1 // loop_exit
      _
    %1515 = vsyncpa [#allocation4], 1
    %s1516 = scalar_lea.sflag [#allocation4], 1
    %1517 = vsyncpa %s1516, 1
    %1518 = vsyncpa [#allocation5], 1
    %s1519 = scalar_lea.sflag [#allocation5], 1
    %1520 = vsyncpa %s1519, 1

</llo_original>
